<compile_context>
chip_gen: v6e
topology: v6e:2x2x1
jax: 0.10.0
libtpu: 0.0.40
codegen_flags: <defaults>
</compile_context>

<pallas_src>
import math

import jax
import jax.numpy as jnp
from jax.experimental import pallas as pl
from jax.experimental.pallas import tpu as pltpu

# ---- module hyper-parameters (small, but consistent with WSIClassifier) ----
N_CLASS = 2     # n_class
FEAT_DIM = 32   # feat_dim (512 in the default resnet18 config; small here)
HIDDEN = 256    # tail hidden width (fixed at 256 in the module)
L = 64          # self.L
D = 32          # self.D
K = 1           # self.K


def _round_up(x, m):
    return (x + m - 1) // m * m


# ---------------------------------------------------------------------------
# Stage 1: per-patch head (1x1 conv + GAP), tail MLP, patch classifier and
# attention score.  Layout: features on sublanes, patches on lanes.
# ---------------------------------------------------------------------------
def _patch_kernel(x_ref, wc_ref, bc_ref, w1_ref, b1_ref, w2_ref, b2_ref,
                  wf_ref, bf_ref, wa2_ref, ba2_ref,
                  h_ref, xp_ref, a_ref, pooled_acc):
    j = pl.program_id(1)                       # spatial tile index ("arbitrary")

    @pl.when(j == 0)
    def _():
        pooled_acc[...] = jnp.zeros_like(pooled_acc)

    # Spatial-sum accumulation (the GAP's 1/HW is folded into wc); zero-padded
    # spatial positions do not perturb the sum.
    x = x_ref[...].astype(jnp.float32)         # (C, TILE_N, TILE_HW)
    pooled_acc[...] += jnp.sum(x, axis=2)      # (C, TILE_N)

    @pl.when(j == pl.num_programs(1) - 1)
    def _():
        pooled = pooled_acc[...]                                              # (C, TN)
        # head: 1x1 conv + GAP  ==  (wc / HW) @ spatial_sum + bc
        feat = jnp.dot(wc_ref[...], pooled,
                       preferred_element_type=jnp.float32) + bc_ref[...]      # (F, TN)
        # tail: Linear -> ReLU -> Linear -> ReLU
        h1 = jnp.maximum(
            jnp.dot(w1_ref[...], feat,
                    preferred_element_type=jnp.float32) + b1_ref[...], 0.0)   # (HID, TN)
        h = jnp.maximum(
            jnp.dot(w2_ref[...], h1,
                    preferred_element_type=jnp.float32) + b2_ref[...], 0.0)   # (L, TN)
        # fused attention-hidden + patch-classifier projection (shared LHS h)
        fused = jnp.dot(wf_ref[...], h,
                        preferred_element_type=jnp.float32) + bf_ref[...]     # (D+NC, TN)
        a1 = jnp.tanh(fused[0:D, :])                                          # (D, TN)
        xp = fused[D:D + N_CLASS, :]                                          # (NC, TN)
        # D -> K=1 projection on VPU/XLU: broadcast-multiply + sublane reduce
        a_un = jnp.sum(a1 * wa2_ref[...], axis=0, keepdims=True) + ba2_ref[...]  # (1, TN)

        h_ref[...] = h
        xp_ref[...] = xp
        a_ref[...] = a_un


# ---------------------------------------------------------------------------
# Stage 2: masked softmax over patches, attention pooling, bag classifier.
# ---------------------------------------------------------------------------
def _finalize_kernel(n_ref, h_ref, a_ref, wcl_ref, bcl_ref, y_ref):
    n_valid = n_ref[0]
    h = h_ref[...]                                             # (L, N_pad)
    a = a_ref[...]                                             # (1, N_pad)
    col = jax.lax.broadcasted_iota(jnp.int32, a.shape, 1)
    valid = col < n_valid                                      # mask padded patches
    a_m = jnp.where(valid, a, jnp.full_like(a, -jnp.inf))
    m = jnp.max(a_m, axis=1, keepdims=True)
    e = jnp.where(valid, jnp.exp(a_m - m), jnp.zeros_like(a))
    s = jnp.sum(e, axis=1, keepdims=True)
    att = e / s                                                # softmax over real patches
    M = jnp.sum(h * att, axis=1, keepdims=True)                # (L, 1)  == (A @ h).T
    y_ref[...] = jnp.dot(wcl_ref[...], M,
                         preferred_element_type=jnp.float32) + bcl_ref[...]   # (NC, 1)


# ---------------------------------------------------------------------------
# Tiling / wrapper
# ---------------------------------------------------------------------------
def _pick_tiles(n, c, hw, itemsize, x_budget_bytes=24 * 2 ** 20):
    # Patch tile = lane dim of the stage-1 outputs -> multiple of 128.
    tile_n = min(_round_up(n, 128), 512)
    # Largest multiple-of-128 spatial tile whose double-buffered x block stays
    # inside the budget (sized conservatively for v7x's 64 MiB VMEM; also fine
    # on v5e/v6e with 128 MiB).
    max_hw = x_budget_bytes // (2 * c * tile_n * itemsize)
    tile_hw = max(128, (max_hw // 128) * 128)
    tile_hw = min(tile_hw, _round_up(hw, 128))
    return tile_n, tile_hw


def wsi_classifier_forward(x, params, *, stream_dtype=jnp.float32):
    """x: (..., C, H, W); leading dims flatten into N patches (torch view(-1,C,H,W)).

    Returns (Y_prob (K, N_CLASS), xp (N, N_CLASS), A_unnorm (N, K)).
    `stream_dtype=jnp.bfloat16` halves the HBM traffic of the dominant x stream
    (recommended on v6e/v7x); all arithmetic stays in f32.
    """
    c, hh, ww = x.shape[-3], x.shape[-2], x.shape[-1]
    hw = hh * ww
    n = math.prod(x.shape[:-3])

    itemsize = jnp.dtype(stream_dtype).itemsize
    tile_n, tile_hw = _pick_tiles(n, c, hw, itemsize)
    n_pad = _round_up(n, tile_n)
    hw_pad = _round_up(hw, tile_hw)

    # Wrapper-side layout plumbing: (N, C, HW) -> (C, N, HW) so the big streamed
    # tensor has N on sublanes and HW on lanes (no 2x sublane padding from the
    # tiny C); zero-pad N and HW up to the tile grid.
    xf = x.reshape(n, c, hw)
    x_cnh = jnp.transpose(xf, (1, 0, 2)).astype(stream_dtype)
    x_cnh = jnp.pad(x_cnh, ((0, 0), (0, n_pad - n), (0, hw_pad - hw)))

    f32 = jnp.float32
    # torch (out, in) weights are used as-is (no transposes anywhere); biases
    # become columns; the GAP's 1/HW is folded into the 1x1-conv weight.
    wc = (params["wc"] / float(hw)).astype(f32)                 # (F, C)
    bc = params["bc"].reshape(FEAT_DIM, 1).astype(f32)
    w1 = params["w1"].astype(f32)                               # (HIDDEN, F)
    b1 = params["b1"].reshape(HIDDEN, 1).astype(f32)
    w2 = params["w2"].astype(f32)                               # (L, HIDDEN)
    b2 = params["b2"].reshape(L, 1).astype(f32)
    wf = jnp.concatenate([params["wa1"], params["wpc"]], axis=0).astype(f32)     # (D+NC, L)
    bf = jnp.concatenate([params["ba1"].reshape(D, 1),
                          params["bpc"].reshape(N_CLASS, 1)], axis=0).astype(f32)
    wa2 = params["wa2"].reshape(D, 1).astype(f32)               # (D, 1) column
    ba2 = params["ba2"].reshape(1, 1).astype(f32)
    wcl = params["wcl"].astype(f32)                             # (NC, L)
    bcl = params["bcl"].reshape(N_CLASS, 1).astype(f32)

    grid = (n_pad // tile_n, hw_pad // tile_hw)
    const2 = lambda i, j: (0, 0)                                # weights stay VMEM-resident

    x_block_bytes = 2 * c * tile_n * tile_hw * itemsize         # double-buffered x tile
    vmem_limit = int(min(64 * 2 ** 20, max(16 * 2 ** 20, 2 * x_block_bytes + 4 * 2 ** 20)))

    h_t, xp_t, a_t = pl.pallas_call(
        _patch_kernel,
        out_shape=(
            jax.ShapeDtypeStruct((L, n_pad), f32),
            jax.ShapeDtypeStruct((N_CLASS, n_pad), f32),
            jax.ShapeDtypeStruct((K, n_pad), f32),
        ),
        grid=grid,
        in_specs=[
            pl.BlockSpec((c, tile_n, tile_hw), lambda i, j: (0, i, j)),
            pl.BlockSpec((FEAT_DIM, c), const2),
            pl.BlockSpec((FEAT_DIM, 1), const2),
            pl.BlockSpec((HIDDEN, FEAT_DIM), const2),
            pl.BlockSpec((HIDDEN, 1), const2),
            pl.BlockSpec((L, HIDDEN), const2),
            pl.BlockSpec((L, 1), const2),
            pl.BlockSpec((D + N_CLASS, L), const2),
            pl.BlockSpec((D + N_CLASS, 1), const2),
            pl.BlockSpec((D, 1), const2),
            pl.BlockSpec((1, 1), const2),
        ],
        out_specs=(
            pl.BlockSpec((L, tile_n), lambda i, j: (0, i)),
            pl.BlockSpec((N_CLASS, tile_n), lambda i, j: (0, i)),
            pl.BlockSpec((K, tile_n), lambda i, j: (0, i)),
        ),
        scratch_shapes=[pltpu.VMEM((c, tile_n), f32)],
        compiler_params=pltpu.CompilerParams(
            dimension_semantics=("parallel", "arbitrary"),
            vmem_limit_bytes=vmem_limit,
        ),
    )(x_cnh, wc, bc, w1, b1, w2, b2, wf, bf, wa2, ba2)

    # Stage 2: masked softmax over patches + attention pooling + bag classifier.
    n_valid = jnp.array([n], dtype=jnp.int32)
    vmem = pl.BlockSpec(memory_space=pltpu.MemorySpace.VMEM)
    y_t = pl.pallas_call(
        _finalize_kernel,
        out_shape=jax.ShapeDtypeStruct((N_CLASS, K), f32),
        in_specs=[
            pl.BlockSpec(memory_space=pltpu.MemorySpace.SMEM),
            vmem, vmem, vmem, vmem,
        ],
        out_specs=vmem,
    )(n_valid, h_t, a_t, wcl, bcl)

    y_prob = y_t.T                        # (K, N_CLASS)   Y_prob (logits)
    xp = xp_t[:, :n].T                    # (N, N_CLASS)   per-patch logits
    a_unnorm = a_t[:, :n].T               # (N, K)         A_unnorm
    return y_prob, xp, a_unnorm


# ---------------------------------------------------------------------------
# Parameters (torch.nn.Linear-style init: U(-1/sqrt(fan_in), 1/sqrt(fan_in)))
# ---------------------------------------------------------------------------
def init_params(key, c_in):
    def linear(k, out_f, in_f):
        k_w, k_b = jax.random.split(k)
        bound = 1.0 / math.sqrt(in_f)
        w = jax.random.uniform(k_w, (out_f, in_f), jnp.float32, -bound, bound)
        b = jax.random.uniform(k_b, (out_f,), jnp.float32, -bound, bound)
        return w, b

    keys = jax.random.split(key, 7)
    p = {}
    p["wc"], p["bc"] = linear(keys[0], FEAT_DIM, c_in)        # head 1x1 conv
    p["w1"], p["b1"] = linear(keys[1], HIDDEN, FEAT_DIM)      # tail[0]
    p["w2"], p["b2"] = linear(keys[2], L, HIDDEN)             # tail[2]
    p["wa1"], p["ba1"] = linear(keys[3], D, L)                # attention[0]
    p["wa2"], p["ba2"] = linear(keys[4], K, D)                # attention[2]
    p["wcl"], p["bcl"] = linear(keys[5], N_CLASS, L * K)      # classifier
    p["wpc"], p["bpc"] = linear(keys[6], N_CLASS, L * K)      # patch_classifier
    return p


def reference_forward(x, params):
    """Pure-JAX reference mirroring the torch forward exactly."""
    c, hh, ww = x.shape[-3], x.shape[-2], x.shape[-1]
    xf = x.reshape(-1, c, hh * ww).astype(jnp.float32)
    pooled = jnp.mean(xf, axis=2)                               # head: 1x1 conv + GAP
    feat = pooled @ params["wc"].T + params["bc"]
    h1 = jax.nn.relu(feat @ params["w1"].T + params["b1"])
    h = jax.nn.relu(h1 @ params["w2"].T + params["b2"])
    xp = h @ params["wpc"].T + params["bpc"]
    a_un = jnp.tanh(h @ params["wa1"].T + params["ba1"]) @ params["wa2"].T + params["ba2"]
    A = jax.nn.softmax(a_un.T, axis=1)
    M = A @ h
    y = M @ params["wcl"].T + params["bcl"]
    return y, xp, a_un


if __name__ == "__main__":
    key = jax.random.PRNGKey(0)
    k_x, k_p = jax.random.split(key)

    # bags=2, patches_per_bag=4, C=4, H=W=16  -> N = 8 patches after view(-1, C, H, W)
    x = jax.random.normal(k_x, (2, 4, 4, 16, 16), dtype=jnp.float32)
    params = init_params(k_p, c_in=4)

    y_prob, xp, a_unnorm = wsi_classifier_forward(x, params)
    jax.block_until_ready((y_prob, xp, a_unnorm))

    assert y_prob.shape == (K, N_CLASS)
    assert xp.shape == (8, N_CLASS)
    assert a_unnorm.shape == (8, K)

    y_r, xp_r, a_r = reference_forward(x, params)
    assert jnp.allclose(y_prob, y_r, rtol=5e-3, atol=5e-3)
    assert jnp.allclose(xp, xp_r, rtol=5e-3, atol=5e-3)
    assert jnp.allclose(a_unnorm, a_r, rtol=5e-3, atol=5e-3)

    print("KERNEL_OK")
</pallas_src>

<mosaic_0001>
module attributes {stable_mosaic.version = 11 : i64} {
  func.func @_patch_kernel(%arg0: i32, %arg1: i32, %arg2: memref<4x128x256xf32, #tpu.memory_space<vmem>>, %arg3: memref<32x4xf32, #tpu.memory_space<vmem>>, %arg4: memref<32x1xf32, #tpu.memory_space<vmem>>, %arg5: memref<256x32xf32, #tpu.memory_space<vmem>>, %arg6: memref<256x1xf32, #tpu.memory_space<vmem>>, %arg7: memref<64x256xf32, #tpu.memory_space<vmem>>, %arg8: memref<64x1xf32, #tpu.memory_space<vmem>>, %arg9: memref<34x64xf32, #tpu.memory_space<vmem>>, %arg10: memref<34x1xf32, #tpu.memory_space<vmem>>, %arg11: memref<32x1xf32, #tpu.memory_space<vmem>>, %arg12: memref<1x1xf32, #tpu.memory_space<vmem>>, %arg13: memref<64x128xf32, #tpu.memory_space<vmem>>, %arg14: memref<2x128xf32, #tpu.memory_space<vmem>>, %arg15: memref<1x128xf32, #tpu.memory_space<vmem>>, %arg16: memref<4x128xf32, #tpu.memory_space<vmem>>) attributes {dimension_semantics = [#tpu.dimension_semantics<parallel>, #tpu.dimension_semantics<arbitrary>], iteration_bounds = array<i64: 1, 1>, scalar_prefetch = 0 : i64, scratch_operands = 1 : i64, tpu.core_type = #tpu.core_type<tc>, window_params = [{transform_indices = @transform_0, window_bounds = array<i64: 4, 128, 256>}, {pipeline_mode = #tpu.pipeline_mode<synchronous>, transform_indices = @transform_1, window_bounds = array<i64: 32, 4>}, {pipeline_mode = #tpu.pipeline_mode<synchronous>, transform_indices = @transform_2, window_bounds = array<i64: 32, 1>}, {pipeline_mode = #tpu.pipeline_mode<synchronous>, transform_indices = @transform_3, window_bounds = array<i64: 256, 32>}, {pipeline_mode = #tpu.pipeline_mode<synchronous>, transform_indices = @transform_4, window_bounds = array<i64: 256, 1>}, {pipeline_mode = #tpu.pipeline_mode<synchronous>, transform_indices = @transform_5, window_bounds = array<i64: 64, 256>}, {pipeline_mode = #tpu.pipeline_mode<synchronous>, transform_indices = @transform_6, window_bounds = array<i64: 64, 1>}, {pipeline_mode = #tpu.pipeline_mode<synchronous>, transform_indices = @transform_7, window_bounds = array<i64: 34, 64>}, {pipeline_mode = #tpu.pipeline_mode<synchronous>, transform_indices = @transform_8, window_bounds = array<i64: 34, 1>}, {pipeline_mode = #tpu.pipeline_mode<synchronous>, transform_indices = @transform_9, window_bounds = array<i64: 32, 1>}, {pipeline_mode = #tpu.pipeline_mode<synchronous>, transform_indices = @transform_10, window_bounds = array<i64: 1, 1>}, {transform_indices = @transform_11, window_bounds = array<i64: 64, 128>}, {transform_indices = @transform_12, window_bounds = array<i64: 2, 128>}, {transform_indices = @transform_13, window_bounds = array<i64: 1, 128>}]} {
    %c0_i32 = arith.constant 0 : i32
    %0 = arith.cmpi eq, %arg1, %c0_i32 : i32
    %1 = arith.extui %0 : i1 to i32
    %c0_i32_0 = arith.constant 0 : i32
    %2 = arith.cmpi ne, %1, %c0_i32_0 : i32
    scf.if %2 {
      %cst_9 = arith.constant 0.000000e+00 : f32
      %11 = vector.broadcast %cst_9 : f32 to vector<4x128xf32>
      %c0_10 = arith.constant 0 : index
      %c0_11 = arith.constant 0 : index
      %12 = vector.load %arg16[%c0_10, %c0_11] : memref<4x128xf32, #tpu.memory_space<vmem>>, vector<4x128xf32>
      tpu.vector_store %arg16[%c0_10, %c0_11], %11 {strides = array<i32>} : memref<4x128xf32, #tpu.memory_space<vmem>>, vector<4x128xf32>,
    } else {
    }
    %c0 = arith.constant 0 : index
    %c0_1 = arith.constant 0 : index
    %c0_2 = arith.constant 0 : index
    %3 = vector.load %arg2[%c0, %c0_1, %c0_2] : memref<4x128x256xf32, #tpu.memory_space<vmem>>, vector<4x128x256xf32>
    %c0_3 = arith.constant 0 : index
    %c0_4 = arith.constant 0 : index
    %4 = vector.load %arg16[%c0_3, %c0_4] : memref<4x128xf32, #tpu.memory_space<vmem>>, vector<4x128xf32>
    %cst = arith.constant dense<0.000000e+00> : vector<4x128xf32>
    %5 = vector.multi_reduction <add>, %3, %cst [2] : vector<4x128x256xf32> to vector<4x128xf32>
    %6 = arith.addf %4, %5 : vector<4x128xf32>
    %c0_5 = arith.constant 0 : index
    %c0_6 = arith.constant 0 : index
    %7 = vector.load %arg16[%c0_5, %c0_6] : memref<4x128xf32, #tpu.memory_space<vmem>>, vector<4x128xf32>
    tpu.vector_store %arg16[%c0_5, %c0_6], %6 {strides = array<i32>} : memref<4x128xf32, #tpu.memory_space<vmem>>, vector<4x128xf32>,
    %c0_i32_7 = arith.constant 0 : i32
    %8 = arith.cmpi eq, %arg1, %c0_i32_7 : i32
    %9 = arith.extui %8 : i1 to i32
    %c0_i32_8 = arith.constant 0 : i32
    %10 = arith.cmpi ne, %9, %c0_i32_8 : i32
    scf.if %10 {
      %c0_9 = arith.constant 0 : index
      %c0_10 = arith.constant 0 : index
      %11 = vector.load %arg16[%c0_9, %c0_10] : memref<4x128xf32, #tpu.memory_space<vmem>>, vector<4x128xf32>
      %c0_11 = arith.constant 0 : index
      %c0_12 = arith.constant 0 : index
      %12 = vector.load %arg3[%c0_11, %c0_12] : memref<32x4xf32, #tpu.memory_space<vmem>>, vector<32x4xf32>
      %cst_13 = arith.constant dense<0.000000e+00> : vector<32x128xf32>
      %13 = tpu.matmul %12, %11, %cst_13 {dimension_numbers = #tpu.dot_dimension_numbers<[1], [0], [0], [1], [0, 0, 1, 1], [], []>} : vector<32x4xf32>, vector<4x128xf32>, vector<32x128xf32> -> vector<32x128xf32>
      %c0_14 = arith.constant 0 : index
      %c0_15 = arith.constant 0 : index
      %14 = vector.load %arg4[%c0_14, %c0_15] : memref<32x1xf32, #tpu.memory_space<vmem>>, vector<32x1xf32>
      %15 = vector.broadcast %14 : vector<32x1xf32> to vector<32x128xf32>
      %16 = arith.addf %13, %15 : vector<32x128xf32>
      %c0_16 = arith.constant 0 : index
      %c0_17 = arith.constant 0 : index
      %17 = vector.load %arg5[%c0_16, %c0_17] : memref<256x32xf32, #tpu.memory_space<vmem>>, vector<256x32xf32>
      %cst_18 = arith.constant dense<0.000000e+00> : vector<256x128xf32>
      %18 = tpu.matmul %17, %16, %cst_18 {dimension_numbers = #tpu.dot_dimension_numbers<[1], [0], [0], [1], [0, 0, 1, 1], [], []>} : vector<256x32xf32>, vector<32x128xf32>, vector<256x128xf32> -> vector<256x128xf32>
      %c0_19 = arith.constant 0 : index
      %c0_20 = arith.constant 0 : index
      %19 = vector.load %arg6[%c0_19, %c0_20] : memref<256x1xf32, #tpu.memory_space<vmem>>, vector<256x1xf32>
      %20 = vector.broadcast %19 : vector<256x1xf32> to vector<256x128xf32>
      %21 = arith.addf %18, %20 : vector<256x128xf32>
      %cst_21 = arith.constant 0.000000e+00 : f32
      %22 = vector.broadcast %cst_21 : f32 to vector<256x128xf32>
      %23 = arith.maximumf %21, %22 : vector<256x128xf32>
      %c0_22 = arith.constant 0 : index
      %c0_23 = arith.constant 0 : index
      %24 = vector.load %arg7[%c0_22, %c0_23] : memref<64x256xf32, #tpu.memory_space<vmem>>, vector<64x256xf32>
      %cst_24 = arith.constant dense<0.000000e+00> : vector<64x128xf32>
      %25 = tpu.matmul %24, %23, %cst_24 {dimension_numbers = #tpu.dot_dimension_numbers<[1], [0], [0], [1], [0, 0, 1, 1], [], []>} : vector<64x256xf32>, vector<256x128xf32>, vector<64x128xf32> -> vector<64x128xf32>
      %c0_25 = arith.constant 0 : index
      %c0_26 = arith.constant 0 : index
      %26 = vector.load %arg8[%c0_25, %c0_26] : memref<64x1xf32, #tpu.memory_space<vmem>>, vector<64x1xf32>
      %27 = vector.broadcast %26 : vector<64x1xf32> to vector<64x128xf32>
      %28 = arith.addf %25, %27 : vector<64x128xf32>
      %cst_27 = arith.constant 0.000000e+00 : f32
      %29 = vector.broadcast %cst_27 : f32 to vector<64x128xf32>
      %30 = arith.maximumf %28, %29 : vector<64x128xf32>
      %c0_28 = arith.constant 0 : index
      %c0_29 = arith.constant 0 : index
      %31 = vector.load %arg9[%c0_28, %c0_29] : memref<34x64xf32, #tpu.memory_space<vmem>>, vector<34x64xf32>
      %cst_30 = arith.constant dense<0.000000e+00> : vector<34x128xf32>
      %32 = tpu.matmul %31, %30, %cst_30 {dimension_numbers = #tpu.dot_dimension_numbers<[1], [0], [0], [1], [0, 0, 1, 1], [], []>} : vector<34x64xf32>, vector<64x128xf32>, vector<34x128xf32> -> vector<34x128xf32>
      %c0_31 = arith.constant 0 : index
      %c0_32 = arith.constant 0 : index
      %33 = vector.load %arg10[%c0_31, %c0_32] : memref<34x1xf32, #tpu.memory_space<vmem>>, vector<34x1xf32>
      %34 = vector.broadcast %33 : vector<34x1xf32> to vector<34x128xf32>
      %35 = arith.addf %32, %34 : vector<34x128xf32>
      %36 = vector.extract_strided_slice %35 {offsets = [0, 0], sizes = [32, 128], strides = [1, 1]} : vector<34x128xf32> to vector<32x128xf32>
      %37 = math.tanh %36 : vector<32x128xf32>
      %38 = vector.extract_strided_slice %35 {offsets = [32, 0], sizes = [2, 128], strides = [1, 1]} : vector<34x128xf32> to vector<2x128xf32>
      %c0_33 = arith.constant 0 : index
      %c0_34 = arith.constant 0 : index
      %39 = vector.load %arg11[%c0_33, %c0_34] : memref<32x1xf32, #tpu.memory_space<vmem>>, vector<32x1xf32>
      %40 = vector.broadcast %39 : vector<32x1xf32> to vector<32x128xf32>
      %41 = arith.mulf %37, %40 : vector<32x128xf32>
      %cst_35 = arith.constant dense<0.000000e+00> : vector<128xf32>
      %42 = vector.multi_reduction <add>, %41, %cst_35 [0] : vector<32x128xf32> to vector<128xf32>
      %43 = vector.shape_cast %42 : vector<128xf32> to vector<1x128xf32>
      %c0_36 = arith.constant 0 : index
      %c0_37 = arith.constant 0 : index
      %44 = vector.load %arg12[%c0_36, %c0_37] : memref<1x1xf32, #tpu.memory_space<vmem>>, vector<1x1xf32>
      %45 = vector.broadcast %44 : vector<1x1xf32> to vector<1x128xf32>
      %46 = arith.addf %43, %45 : vector<1x128xf32>
      %c0_38 = arith.constant 0 : index
      %c0_39 = arith.constant 0 : index
      %47 = vector.load %arg13[%c0_38, %c0_39] : memref<64x128xf32, #tpu.memory_space<vmem>>, vector<64x128xf32>
      tpu.vector_store %arg13[%c0_38, %c0_39], %30 {strides = array<i32>} : memref<64x128xf32, #tpu.memory_space<vmem>>, vector<64x128xf32>,
      %c0_40 = arith.constant 0 : index
      %c0_41 = arith.constant 0 : index
      %48 = vector.load %arg14[%c0_40, %c0_41] : memref<2x128xf32, #tpu.memory_space<vmem>>, vector<2x128xf32>
      tpu.vector_store %arg14[%c0_40, %c0_41], %38 {strides = array<i32>} : memref<2x128xf32, #tpu.memory_space<vmem>>, vector<2x128xf32>,
      %c0_42 = arith.constant 0 : index
      %c0_43 = arith.constant 0 : index
      %49 = vector.load %arg15[%c0_42, %c0_43] : memref<1x128xf32, #tpu.memory_space<vmem>>, vector<1x128xf32>
      tpu.vector_store %arg15[%c0_42, %c0_43], %46 {strides = array<i32>} : memref<1x128xf32, #tpu.memory_space<vmem>>, vector<1x128xf32>,
    } else {
    }
    return
  }
  func.func @transform_0(%arg0: i32, %arg1: i32) -> (i32, i32, i32) {
    %c0_i32 = arith.constant 0 : i32
    %c0_i32_0 = arith.constant 0 : i32
    return %c0_i32, %arg0, %arg1 : i32, i32, i32
  }
  func.func @transform_1(%arg0: i32, %arg1: i32) -> (i32, i32) {
    %c0_i32 = arith.constant 0 : i32
    %c0_i32_0 = arith.constant 0 : i32
    %c0_i32_1 = arith.constant 0 : i32
    return %c0_i32, %c0_i32_0 : i32, i32
  }
  func.func @transform_2(%arg0: i32, %arg1: i32) -> (i32, i32) {
    %c0_i32 = arith.constant 0 : i32
    %c0_i32_0 = arith.constant 0 : i32
    %c0_i32_1 = arith.constant 0 : i32
    return %c0_i32, %c0_i32_0 : i32, i32
  }
  func.func @transform_3(%arg0: i32, %arg1: i32) -> (i32, i32) {
    %c0_i32 = arith.constant 0 : i32
    %c0_i32_0 = arith.constant 0 : i32
    %c0_i32_1 = arith.constant 0 : i32
    return %c0_i32, %c0_i32_0 : i32, i32
  }
  func.func @transform_4(%arg0: i32, %arg1: i32) -> (i32, i32) {
    %c0_i32 = arith.constant 0 : i32
    %c0_i32_0 = arith.constant 0 : i32
    %c0_i32_1 = arith.constant 0 : i32
    return %c0_i32, %c0_i32_0 : i32, i32
  }
  func.func @transform_5(%arg0: i32, %arg1: i32) -> (i32, i32) {
    %c0_i32 = arith.constant 0 : i32
    %c0_i32_0 = arith.constant 0 : i32
    %c0_i32_1 = arith.constant 0 : i32
    return %c0_i32, %c0_i32_0 : i32, i32
  }
  func.func @transform_6(%arg0: i32, %arg1: i32) -> (i32, i32) {
    %c0_i32 = arith.constant 0 : i32
    %c0_i32_0 = arith.constant 0 : i32
    %c0_i32_1 = arith.constant 0 : i32
    return %c0_i32, %c0_i32_0 : i32, i32
  }
  func.func @transform_7(%arg0: i32, %arg1: i32) -> (i32, i32) {
    %c0_i32 = arith.constant 0 : i32
    %c0_i32_0 = arith.constant 0 : i32
    %c0_i32_1 = arith.constant 0 : i32
    return %c0_i32, %c0_i32_0 : i32, i32
  }
  func.func @transform_8(%arg0: i32, %arg1: i32) -> (i32, i32) {
    %c0_i32 = arith.constant 0 : i32
    %c0_i32_0 = arith.constant 0 : i32
    %c0_i32_1 = arith.constant 0 : i32
    return %c0_i32, %c0_i32_0 : i32, i32
  }
  func.func @transform_9(%arg0: i32, %arg1: i32) -> (i32, i32) {
    %c0_i32 = arith.constant 0 : i32
    %c0_i32_0 = arith.constant 0 : i32
    %c0_i32_1 = arith.constant 0 : i32
    return %c0_i32, %c0_i32_0 : i32, i32
  }
  func.func @transform_10(%arg0: i32, %arg1: i32) -> (i32, i32) {
    %c0_i32 = arith.constant 0 : i32
    %c0_i32_0 = arith.constant 0 : i32
    %c0_i32_1 = arith.constant 0 : i32
    return %c0_i32, %c0_i32_0 : i32, i32
  }
  func.func @transform_11(%arg0: i32, %arg1: i32) -> (i32, i32) {
    %c0_i32 = arith.constant 0 : i32
    %c0_i32_0 = arith.constant 0 : i32
    return %c0_i32, %arg0 : i32, i32
  }
  func.func @transform_12(%arg0: i32, %arg1: i32) -> (i32, i32) {
    %c0_i32 = arith.constant 0 : i32
    %c0_i32_0 = arith.constant 0 : i32
    return %c0_i32, %arg0 : i32, i32
  }
  func.func @transform_13(%arg0: i32, %arg1: i32) -> (i32, i32) {
    %c0_i32 = arith.constant 0 : i32
    %c0_i32_0 = arith.constant 0 : i32
    return %c0_i32, %arg0 : i32, i32
  }
}

</mosaic_0001>

<llo_original>
// kernel: tpu_custom_call.1
$region0: #{tpu_custom_call.1}
  #allocation0 [shape = 'u32[]', space=smem, size = 0x4, offset = 0x4, fixed_abs, tag = 'smem constant byte address 0x4 - core index']
  #allocation1 [shape = 'u32[144,128]{1,0:T(1,128)}', space=vmem, size = 0x12000, scoped, tag = 'internal scratch']
  #allocation2 [shape = 'f32[4,128]{1,0:T(4,128)}', space=vmem, size = 0x800, scoped, tag = 'scratch operand']
  #allocation3 [shape = 'f32[1,1]{1,0:T(1,128)S(1)}', space=vmem, size = 0x200, scoped, tag = 'scoped memory for tpu_custom_call.1']
  %s0 = inlined_call_operand.hbm [shape: f32[4,128,256], index: 0, kind: input, shape index: {}]
  %s1 = inlined_call_operand.vmem [shape: f32[32,4], index: 1, kind: input, shape index: {}]
  %s2 = inlined_call_operand.vmem [shape: f32[32,1], index: 2, kind: input, shape index: {}]
  %s3 = inlined_call_operand.vmem [shape: f32[256,32], index: 3, kind: input, shape index: {}]
  %s4 = inlined_call_operand.vmem [shape: f32[256,1], index: 4, kind: input, shape index: {}]
  %s5 = inlined_call_operand.vmem [shape: f32[64,256], index: 5, kind: input, shape index: {}]
  %s6 = inlined_call_operand.vmem [shape: f32[64,1], index: 6, kind: input, shape index: {}]
  %s7 = inlined_call_operand.vmem [shape: f32[34,64], index: 7, kind: input, shape index: {}]
  %s8 = inlined_call_operand.vmem [shape: f32[34,1], index: 8, kind: input, shape index: {}]
  %s9 = inlined_call_operand.vmem [shape: f32[32,1], index: 9, kind: input, shape index: {}]
  %s10 = inlined_call_operand.<no memory space> [shape: f32[1,1], index: 10, kind: input, shape index: {}]
  %s11 = inlined_call_operand.hbm [shape: f32[64,128], index: 11, kind: output, shape index: {0}]
  %s12 = inlined_call_operand.hbm [shape: f32[2,128], index: 12, kind: output, shape index: {1}]
  %s13 = inlined_call_operand.hbm [shape: f32[1,128], index: 13, kind: output, shape index: {2}]
  %14 = xla_tuple %s11, %s12, %s13
  %s15 = sld [smem:[#allocation0]]
  $region82: #{tpu_custom_call.1} parent=0
    _
  %s17 = ssub.s32 1, %s15
  %s18 = scalar_select 0, %s17, %s15
  %v19 = vstv %s10
  %20 = vst [vmem:[#allocation3] sm:$0x1] %v19
  $region1: #{tpu_custom_call.1} parent=0
    #allocation4 [shape = 'u8[524288]{0}', space=vmem, size = 0x80000, scoped, tag = 'input window, operand 0, single buffered']
    #allocation5 [shape = 's32[1]{0}', space=sflag, size = 0x4, scoped, tag = 'scoped memory for tpu_custom_call.1']
    #allocation6 [shape = 's32[1]{0}', space=sflag, size = 0x4, scoped, tag = 'scoped memory for tpu_custom_call.1']
    #allocation7 [shape = 'u8[32768]{0}', space=vmem, size = 0x8000, scoped, tag = 'output window, operand 0, single buffered']
    #allocation8 [shape = 'u8[1024]{0}', space=vmem, size = 0x400, scoped, tag = 'output window, operand 1, single buffered']
    #allocation9 [shape = 's32[1]{0}', space=sflag, size = 0x4, scoped, tag = 'scoped memory for tpu_custom_call.1']
    #allocation10 [shape = 'u8[512]{0}', space=vmem, size = 0x400, scoped, tag = 'output window, operand 2, single buffered']
    %21 = vsyncpa [#allocation5], 0
    %22 = vsyncpa [#allocation6], 0
    %23 = vsyncpa [#allocation9], 0
    // Predicated region
    $region2: #{tpu_custom_call.1} parent=1 // pred_check
      _
    $region3: #{tpu_custom_call.1} parent=1 // pred_check_branch
      %25 = sbr.rel (0) target = $region5
    $region4: #{tpu_custom_call.1} parent=1 // pred_region
      %s27 = ssub.s32 16384, 16384
      %28 = vsyncadd [#allocation5], %s27
      %s29 = sshll.u32 [#allocation4], 4
      %s30 = int_to_ptr.vmem [resolvable:$true] %s29
      %35 = dma.hbm_to_vmem [thread:$0]  %s0, 16384, %s30, [#allocation5], 256, 256, 16
    $region5: #{tpu_custom_call.1} parent=1 // pred_fallthru
      _
    // Predicated region
    $region6: #{tpu_custom_call.1} parent=1 // pred_check
      _
    $region7: #{tpu_custom_call.1} parent=1 // pred_check_branch
      %37 = sbr.rel (0) target = $region9
    $region8: #{tpu_custom_call.1} parent=1 // pred_region
      _
    $region9: #{tpu_custom_call.1} parent=1 // pred_fallthru
      _
    // Predicated region
    $region10: #{tpu_custom_call.1} parent=1 // pred_check
      _
    $region11: #{tpu_custom_call.1} parent=1 // pred_check_branch
      %39 = sbr.rel (0) target = $region13
    $region12: #{tpu_custom_call.1} parent=1 // pred_region
      _
    $region13: #{tpu_custom_call.1} parent=1 // pred_fallthru
      _
    // Predicated region
    $region14: #{tpu_custom_call.1} parent=1 // pred_check
      _
    $region15: #{tpu_custom_call.1} parent=1 // pred_check_branch
      %41 = sbr.rel (0) target = $region17
    $region16: #{tpu_custom_call.1} parent=1 // pred_region
      _
    $region17: #{tpu_custom_call.1} parent=1 // pred_fallthru
      _
    // Predicated region
    $region18: #{tpu_custom_call.1} parent=1 // pred_check
      _
    $region19: #{tpu_custom_call.1} parent=1 // pred_check_branch
      %43 = sbr.rel (0) target = $region21
    $region20: #{tpu_custom_call.1} parent=1 // pred_region
      _
    $region21: #{tpu_custom_call.1} parent=1 // pred_fallthru
      _
    // Predicated region
    $region22: #{tpu_custom_call.1} parent=1 // pred_check
      _
    $region23: #{tpu_custom_call.1} parent=1 // pred_check_branch
      %45 = sbr.rel (0) target = $region25
    $region24: #{tpu_custom_call.1} parent=1 // pred_region
      _
    $region25: #{tpu_custom_call.1} parent=1 // pred_fallthru
      _
    // Predicated region
    $region26: #{tpu_custom_call.1} parent=1 // pred_check
      _
    $region27: #{tpu_custom_call.1} parent=1 // pred_check_branch
      %47 = sbr.rel (0) target = $region29
    $region28: #{tpu_custom_call.1} parent=1 // pred_region
      _
    $region29: #{tpu_custom_call.1} parent=1 // pred_fallthru
      _
    // Predicated region
    $region30: #{tpu_custom_call.1} parent=1 // pred_check
      _
    $region31: #{tpu_custom_call.1} parent=1 // pred_check_branch
      %49 = sbr.rel (0) target = $region33
    $region32: #{tpu_custom_call.1} parent=1 // pred_region
      _
    $region33: #{tpu_custom_call.1} parent=1 // pred_fallthru
      _
    // Predicated region
    $region34: #{tpu_custom_call.1} parent=1 // pred_check
      _
    $region35: #{tpu_custom_call.1} parent=1 // pred_check_branch
      %51 = sbr.rel (0) target = $region37
    $region36: #{tpu_custom_call.1} parent=1 // pred_region
      _
    $region37: #{tpu_custom_call.1} parent=1 // pred_fallthru
      _
    // Predicated region
    $region38: #{tpu_custom_call.1} parent=1 // pred_check
      _
    $region39: #{tpu_custom_call.1} parent=1 // pred_check_branch
      %53 = sbr.rel (0) target = $region41
    $region40: #{tpu_custom_call.1} parent=1 // pred_region
      _
    $region41: #{tpu_custom_call.1} parent=1 // pred_fallthru
      _
    // Predicated region
    $region42: #{tpu_custom_call.1} parent=1 // pred_check
      _
    $region43: #{tpu_custom_call.1} parent=1 // pred_check_branch
      %55 = sbr.rel (0) target = $region45
    $region44: #{tpu_custom_call.1} parent=1 // pred_region
      _
    $region45: #{tpu_custom_call.1} parent=1 // pred_fallthru
      _
    // Predicated region
    $region46: #{tpu_custom_call.1} parent=1 // pred_check
      _
    $region47: #{tpu_custom_call.1} parent=1 // pred_check_branch
      %57 = sbr.rel (0) target = $region49
    $region48: #{tpu_custom_call.1} parent=1 // pred_region
      %58 = dma.done [#allocation5], 16384
    $region49: #{tpu_custom_call.1} parent=1 // pred_fallthru
      _
    %p59 = scmp.eq.s32.totalorder 0, 0
    // Predicated region
    $region50: #{tpu_custom_call.1} parent=1 // pred_check
      %p60 = pneg %p59
    $region51: #{tpu_custom_call.1} parent=1 // pred_check_branch
      %62 = sbr.rel (%p60) target = $region53
    $region52: #{tpu_custom_call.1} parent=1 // pred_region
      %63 = vst [vmem:[#allocation2] sm:$0xf] 0.0
    $region53: #{tpu_custom_call.1} parent=1 // pred_fallthru
      _
    %v64 = vld [vmem:[#allocation4] sm:$0xff]
    %v65 = vld [vmem:[#allocation4 + $0x8] sm:$0xff]
    %v66 = vld [vmem:[#allocation4 + $0x10] sm:$0xff]
    %v67 = vld [vmem:[#allocation4 + $0x18] sm:$0xff]
    %v68 = vld [vmem:[#allocation4 + $0x20] sm:$0xff]
    %v69 = vld [vmem:[#allocation4 + $0x28] sm:$0xff]
    %v70 = vld [vmem:[#allocation4 + $0x30] sm:$0xff]
    %v71 = vld [vmem:[#allocation4 + $0x38] sm:$0xff]
    %v72 = vld [vmem:[#allocation4 + $0x40] sm:$0xff]
    %v73 = vld [vmem:[#allocation4 + $0x48] sm:$0xff]
    %v74 = vld [vmem:[#allocation4 + $0x50] sm:$0xff]
    %v75 = vld [vmem:[#allocation4 + $0x58] sm:$0xff]
    %v76 = vld [vmem:[#allocation4 + $0x60] sm:$0xff]
    %v77 = vld [vmem:[#allocation4 + $0x68] sm:$0xff]
    %v78 = vld [vmem:[#allocation4 + $0x70] sm:$0xff]
    %v79 = vld [vmem:[#allocation4 + $0x78] sm:$0xff]
    %v80 = vld [vmem:[#allocation4 + $0x80] sm:$0xff]
    %v81 = vld [vmem:[#allocation4 + $0x88] sm:$0xff]
    %v82 = vld [vmem:[#allocation4 + $0x90] sm:$0xff]
    %v83 = vld [vmem:[#allocation4 + $0x98] sm:$0xff]
    %v84 = vld [vmem:[#allocation4 + $0xa0] sm:$0xff]
    %v85 = vld [vmem:[#allocation4 + $0xa8] sm:$0xff]
    %v86 = vld [vmem:[#allocation4 + $0xb0] sm:$0xff]
    %v87 = vld [vmem:[#allocation4 + $0xb8] sm:$0xff]
    %v88 = vld [vmem:[#allocation4 + $0xc0] sm:$0xff]
    %v89 = vld [vmem:[#allocation4 + $0xc8] sm:$0xff]
    %v90 = vld [vmem:[#allocation4 + $0xd0] sm:$0xff]
    %v91 = vld [vmem:[#allocation4 + $0xd8] sm:$0xff]
    %v92 = vld [vmem:[#allocation4 + $0xe0] sm:$0xff]
    %v93 = vld [vmem:[#allocation4 + $0xe8] sm:$0xff]
    %v94 = vld [vmem:[#allocation4 + $0xf0] sm:$0xff]
    %v95 = vld [vmem:[#allocation4 + $0xf8] sm:$0xff]
    %v96 = vld [vmem:[#allocation4 + $0x100] sm:$0xff]
    %v97 = vld [vmem:[#allocation4 + $0x108] sm:$0xff]
    %v98 = vld [vmem:[#allocation4 + $0x110] sm:$0xff]
    %v99 = vld [vmem:[#allocation4 + $0x118] sm:$0xff]
    %v100 = vld [vmem:[#allocation4 + $0x120] sm:$0xff]
    %v101 = vld [vmem:[#allocation4 + $0x128] sm:$0xff]
    %v102 = vld [vmem:[#allocation4 + $0x130] sm:$0xff]
    %v103 = vld [vmem:[#allocation4 + $0x138] sm:$0xff]
    %v104 = vld [vmem:[#allocation4 + $0x140] sm:$0xff]
    %v105 = vld [vmem:[#allocation4 + $0x148] sm:$0xff]
    %v106 = vld [vmem:[#allocation4 + $0x150] sm:$0xff]
    %v107 = vld [vmem:[#allocation4 + $0x158] sm:$0xff]
    %v108 = vld [vmem:[#allocation4 + $0x160] sm:$0xff]
    %v109 = vld [vmem:[#allocation4 + $0x168] sm:$0xff]
    %v110 = vld [vmem:[#allocation4 + $0x170] sm:$0xff]
    %v111 = vld [vmem:[#allocation4 + $0x178] sm:$0xff]
    %v112 = vld [vmem:[#allocation4 + $0x180] sm:$0xff]
    %v113 = vld [vmem:[#allocation4 + $0x188] sm:$0xff]
    %v114 = vld [vmem:[#allocation4 + $0x190] sm:$0xff]
    %v115 = vld [vmem:[#allocation4 + $0x198] sm:$0xff]
    %v116 = vld [vmem:[#allocation4 + $0x1a0] sm:$0xff]
    %v117 = vld [vmem:[#allocation4 + $0x1a8] sm:$0xff]
    %v118 = vld [vmem:[#allocation4 + $0x1b0] sm:$0xff]
    %v119 = vld [vmem:[#allocation4 + $0x1b8] sm:$0xff]
    %v120 = vld [vmem:[#allocation4 + $0x1c0] sm:$0xff]
    %v121 = vld [vmem:[#allocation4 + $0x1c8] sm:$0xff]
    %v122 = vld [vmem:[#allocation4 + $0x1d0] sm:$0xff]
    %v123 = vld [vmem:[#allocation4 + $0x1d8] sm:$0xff]
    %v124 = vld [vmem:[#allocation4 + $0x1e0] sm:$0xff]
    %v125 = vld [vmem:[#allocation4 + $0x1e8] sm:$0xff]
    %v126 = vld [vmem:[#allocation4 + $0x1f0] sm:$0xff]
    %v127 = vld [vmem:[#allocation4 + $0x1f8] sm:$0xff]
    %v128 = vld [vmem:[#allocation4 + $0x200] sm:$0xff]
    %v129 = vld [vmem:[#allocation4 + $0x208] sm:$0xff]
    %v130 = vld [vmem:[#allocation4 + $0x210] sm:$0xff]
    %v131 = vld [vmem:[#allocation4 + $0x218] sm:$0xff]
    %v132 = vld [vmem:[#allocation4 + $0x220] sm:$0xff]
    %v133 = vld [vmem:[#allocation4 + $0x228] sm:$0xff]
    %v134 = vld [vmem:[#allocation4 + $0x230] sm:$0xff]
    %v135 = vld [vmem:[#allocation4 + $0x238] sm:$0xff]
    %v136 = vld [vmem:[#allocation4 + $0x240] sm:$0xff]
    %v137 = vld [vmem:[#allocation4 + $0x248] sm:$0xff]
    %v138 = vld [vmem:[#allocation4 + $0x250] sm:$0xff]
    %v139 = vld [vmem:[#allocation4 + $0x258] sm:$0xff]
    %v140 = vld [vmem:[#allocation4 + $0x260] sm:$0xff]
    %v141 = vld [vmem:[#allocation4 + $0x268] sm:$0xff]
    %v142 = vld [vmem:[#allocation4 + $0x270] sm:$0xff]
    %v143 = vld [vmem:[#allocation4 + $0x278] sm:$0xff]
    %v144 = vld [vmem:[#allocation4 + $0x280] sm:$0xff]
    %v145 = vld [vmem:[#allocation4 + $0x288] sm:$0xff]
    %v146 = vld [vmem:[#allocation4 + $0x290] sm:$0xff]
    %v147 = vld [vmem:[#allocation4 + $0x298] sm:$0xff]
    %v148 = vld [vmem:[#allocation4 + $0x2a0] sm:$0xff]
    %v149 = vld [vmem:[#allocation4 + $0x2a8] sm:$0xff]
    %v150 = vld [vmem:[#allocation4 + $0x2b0] sm:$0xff]
    %v151 = vld [vmem:[#allocation4 + $0x2b8] sm:$0xff]
    %v152 = vld [vmem:[#allocation4 + $0x2c0] sm:$0xff]
    %v153 = vld [vmem:[#allocation4 + $0x2c8] sm:$0xff]
    %v154 = vld [vmem:[#allocation4 + $0x2d0] sm:$0xff]
    %v155 = vld [vmem:[#allocation4 + $0x2d8] sm:$0xff]
    %v156 = vld [vmem:[#allocation4 + $0x2e0] sm:$0xff]
    %v157 = vld [vmem:[#allocation4 + $0x2e8] sm:$0xff]
    %v158 = vld [vmem:[#allocation4 + $0x2f0] sm:$0xff]
    %v159 = vld [vmem:[#allocation4 + $0x2f8] sm:$0xff]
    %v160 = vld [vmem:[#allocation4 + $0x300] sm:$0xff]
    %v161 = vld [vmem:[#allocation4 + $0x308] sm:$0xff]
    %v162 = vld [vmem:[#allocation4 + $0x310] sm:$0xff]
    %v163 = vld [vmem:[#allocation4 + $0x318] sm:$0xff]
    %v164 = vld [vmem:[#allocation4 + $0x320] sm:$0xff]
    %v165 = vld [vmem:[#allocation4 + $0x328] sm:$0xff]
    %v166 = vld [vmem:[#allocation4 + $0x330] sm:$0xff]
    %v167 = vld [vmem:[#allocation4 + $0x338] sm:$0xff]
    %v168 = vld [vmem:[#allocation4 + $0x340] sm:$0xff]
    %v169 = vld [vmem:[#allocation4 + $0x348] sm:$0xff]
    %v170 = vld [vmem:[#allocation4 + $0x350] sm:$0xff]
    %v171 = vld [vmem:[#allocation4 + $0x358] sm:$0xff]
    %v172 = vld [vmem:[#allocation4 + $0x360] sm:$0xff]
    %v173 = vld [vmem:[#allocation4 + $0x368] sm:$0xff]
    %v174 = vld [vmem:[#allocation4 + $0x370] sm:$0xff]
    %v175 = vld [vmem:[#allocation4 + $0x378] sm:$0xff]
    %v176 = vld [vmem:[#allocation4 + $0x380] sm:$0xff]
    %v177 = vld [vmem:[#allocation4 + $0x388] sm:$0xff]
    %v178 = vld [vmem:[#allocation4 + $0x390] sm:$0xff]
    %v179 = vld [vmem:[#allocation4 + $0x398] sm:$0xff]
    %v180 = vld [vmem:[#allocation4 + $0x3a0] sm:$0xff]
    %v181 = vld [vmem:[#allocation4 + $0x3a8] sm:$0xff]
    %v182 = vld [vmem:[#allocation4 + $0x3b0] sm:$0xff]
    %v183 = vld [vmem:[#allocation4 + $0x3b8] sm:$0xff]
    %v184 = vld [vmem:[#allocation4 + $0x3c0] sm:$0xff]
    %v185 = vld [vmem:[#allocation4 + $0x3c8] sm:$0xff]
    %v186 = vld [vmem:[#allocation4 + $0x3d0] sm:$0xff]
    %v187 = vld [vmem:[#allocation4 + $0x3d8] sm:$0xff]
    %v188 = vld [vmem:[#allocation4 + $0x3e0] sm:$0xff]
    %v189 = vld [vmem:[#allocation4 + $0x3e8] sm:$0xff]
    %v190 = vld [vmem:[#allocation4 + $0x3f0] sm:$0xff]
    %v191 = vld [vmem:[#allocation4 + $0x3f8] sm:$0xff]
    %v192 = vld [vmem:[#allocation2] sm:$0xf]
    %v193 = vadd.f32 %v64, %v65
    %194 = vadd.xlane.f32.xlu0 %v193
    %v195 = vpop.xlane.xlu0 %194
    %v196 = vadd.f32 %v66, %v67
    %197 = vadd.xlane.f32.xlu0 %v196
    %v198 = vpop.xlane.xlu0 %197
    %v199 = vadd.f32 %v68, %v69
    %200 = vadd.xlane.f32.xlu0 %v199
    %v201 = vpop.xlane.xlu0 %200
    %v202 = vadd.f32 %v70, %v71
    %203 = vadd.xlane.f32.xlu0 %v202
    %v204 = vpop.xlane.xlu0 %203
    %v205 = vadd.f32 %v72, %v73
    %206 = vadd.xlane.f32.xlu0 %v205
    %v207 = vpop.xlane.xlu0 %206
    %v208 = vadd.f32 %v74, %v75
    %209 = vadd.xlane.f32.xlu0 %v208
    %v210 = vpop.xlane.xlu0 %209
    %v211 = vadd.f32 %v76, %v77
    %212 = vadd.xlane.f32.xlu0 %v211
    %v213 = vpop.xlane.xlu0 %212
    %v214 = vadd.f32 %v78, %v79
    %215 = vadd.xlane.f32.xlu0 %v214
    %v216 = vpop.xlane.xlu0 %215
    %v217 = vadd.f32 %v80, %v81
    %218 = vadd.xlane.f32.xlu0 %v217
    %v219 = vpop.xlane.xlu0 %218
    %v220 = vadd.f32 %v82, %v83
    %221 = vadd.xlane.f32.xlu0 %v220
    %v222 = vpop.xlane.xlu0 %221
    %v223 = vadd.f32 %v84, %v85
    %224 = vadd.xlane.f32.xlu0 %v223
    %v225 = vpop.xlane.xlu0 %224
    %v226 = vadd.f32 %v86, %v87
    %227 = vadd.xlane.f32.xlu0 %v226
    %v228 = vpop.xlane.xlu0 %227
    %v229 = vadd.f32 %v88, %v89
    %230 = vadd.xlane.f32.xlu0 %v229
    %v231 = vpop.xlane.xlu0 %230
    %v232 = vadd.f32 %v90, %v91
    %233 = vadd.xlane.f32.xlu0 %v232
    %v234 = vpop.xlane.xlu0 %233
    %v235 = vadd.f32 %v92, %v93
    %236 = vadd.xlane.f32.xlu0 %v235
    %v237 = vpop.xlane.xlu0 %236
    %v238 = vadd.f32 %v94, %v95
    %239 = vadd.xlane.f32.xlu0 %v238
    %v240 = vpop.xlane.xlu0 %239
    %v241 = vadd.f32 %v96, %v97
    %242 = vadd.xlane.f32.xlu0 %v241
    %v243 = vpop.xlane.xlu0 %242
    %v244 = vadd.f32 %v98, %v99
    %245 = vadd.xlane.f32.xlu0 %v244
    %v246 = vpop.xlane.xlu0 %245
    %v247 = vadd.f32 %v100, %v101
    %248 = vadd.xlane.f32.xlu0 %v247
    %v249 = vpop.xlane.xlu0 %248
    %v250 = vadd.f32 %v102, %v103
    %251 = vadd.xlane.f32.xlu0 %v250
    %v252 = vpop.xlane.xlu0 %251
    %v253 = vadd.f32 %v104, %v105
    %254 = vadd.xlane.f32.xlu0 %v253
    %v255 = vpop.xlane.xlu0 %254
    %v256 = vadd.f32 %v106, %v107
    %257 = vadd.xlane.f32.xlu0 %v256
    %v258 = vpop.xlane.xlu0 %257
    %v259 = vadd.f32 %v108, %v109
    %260 = vadd.xlane.f32.xlu0 %v259
    %v261 = vpop.xlane.xlu0 %260
    %v262 = vadd.f32 %v110, %v111
    %263 = vadd.xlane.f32.xlu0 %v262
    %v264 = vpop.xlane.xlu0 %263
    %v265 = vadd.f32 %v112, %v113
    %266 = vadd.xlane.f32.xlu0 %v265
    %v267 = vpop.xlane.xlu0 %266
    %v268 = vadd.f32 %v114, %v115
    %269 = vadd.xlane.f32.xlu0 %v268
    %v270 = vpop.xlane.xlu0 %269
    %v271 = vadd.f32 %v116, %v117
    %272 = vadd.xlane.f32.xlu0 %v271
    %v273 = vpop.xlane.xlu0 %272
    %v274 = vadd.f32 %v118, %v119
    %275 = vadd.xlane.f32.xlu0 %v274
    %v276 = vpop.xlane.xlu0 %275
    %v277 = vadd.f32 %v120, %v121
    %278 = vadd.xlane.f32.xlu0 %v277
    %v279 = vpop.xlane.xlu0 %278
    %v280 = vadd.f32 %v122, %v123
    %281 = vadd.xlane.f32.xlu0 %v280
    %v282 = vpop.xlane.xlu0 %281
    %v283 = vadd.f32 %v124, %v125
    %284 = vadd.xlane.f32.xlu0 %v283
    %v285 = vpop.xlane.xlu0 %284
    %v286 = vadd.f32 %v126, %v127
    %287 = vadd.xlane.f32.xlu0 %v286
    %v288 = vpop.xlane.xlu0 %287
    %v289 = vadd.f32 %v128, %v129
    %290 = vadd.xlane.f32.xlu0 %v289
    %v291 = vpop.xlane.xlu0 %290
    %v292 = vadd.f32 %v130, %v131
    %293 = vadd.xlane.f32.xlu0 %v292
    %v294 = vpop.xlane.xlu0 %293
    %v295 = vadd.f32 %v132, %v133
    %296 = vadd.xlane.f32.xlu0 %v295
    %v297 = vpop.xlane.xlu0 %296
    %v298 = vadd.f32 %v134, %v135
    %299 = vadd.xlane.f32.xlu0 %v298
    %v300 = vpop.xlane.xlu0 %299
    %v301 = vadd.f32 %v136, %v137
    %302 = vadd.xlane.f32.xlu0 %v301
    %v303 = vpop.xlane.xlu0 %302
    %v304 = vadd.f32 %v138, %v139
    %305 = vadd.xlane.f32.xlu0 %v304
    %v306 = vpop.xlane.xlu0 %305
    %v307 = vadd.f32 %v140, %v141
    %308 = vadd.xlane.f32.xlu0 %v307
    %v309 = vpop.xlane.xlu0 %308
    %v310 = vadd.f32 %v142, %v143
    %311 = vadd.xlane.f32.xlu0 %v310
    %v312 = vpop.xlane.xlu0 %311
    %v313 = vadd.f32 %v144, %v145
    %314 = vadd.xlane.f32.xlu0 %v313
    %v315 = vpop.xlane.xlu0 %314
    %v316 = vadd.f32 %v146, %v147
    %317 = vadd.xlane.f32.xlu0 %v316
    %v318 = vpop.xlane.xlu0 %317
    %v319 = vadd.f32 %v148, %v149
    %320 = vadd.xlane.f32.xlu0 %v319
    %v321 = vpop.xlane.xlu0 %320
    %v322 = vadd.f32 %v150, %v151
    %323 = vadd.xlane.f32.xlu0 %v322
    %v324 = vpop.xlane.xlu0 %323
    %v325 = vadd.f32 %v152, %v153
    %326 = vadd.xlane.f32.xlu0 %v325
    %v327 = vpop.xlane.xlu0 %326
    %v328 = vadd.f32 %v154, %v155
    %329 = vadd.xlane.f32.xlu0 %v328
    %v330 = vpop.xlane.xlu0 %329
    %v331 = vadd.f32 %v156, %v157
    %332 = vadd.xlane.f32.xlu0 %v331
    %v333 = vpop.xlane.xlu0 %332
    %v334 = vadd.f32 %v158, %v159
    %335 = vadd.xlane.f32.xlu0 %v334
    %v336 = vpop.xlane.xlu0 %335
    %v337 = vadd.f32 %v160, %v161
    %338 = vadd.xlane.f32.xlu0 %v337
    %v339 = vpop.xlane.xlu0 %338
    %v340 = vadd.f32 %v162, %v163
    %341 = vadd.xlane.f32.xlu0 %v340
    %v342 = vpop.xlane.xlu0 %341
    %v343 = vadd.f32 %v164, %v165
    %344 = vadd.xlane.f32.xlu0 %v343
    %v345 = vpop.xlane.xlu0 %344
    %v346 = vadd.f32 %v166, %v167
    %347 = vadd.xlane.f32.xlu0 %v346
    %v348 = vpop.xlane.xlu0 %347
    %v349 = vadd.f32 %v168, %v169
    %350 = vadd.xlane.f32.xlu0 %v349
    %v351 = vpop.xlane.xlu0 %350
    %v352 = vadd.f32 %v170, %v171
    %353 = vadd.xlane.f32.xlu0 %v352
    %v354 = vpop.xlane.xlu0 %353
    %v355 = vadd.f32 %v172, %v173
    %356 = vadd.xlane.f32.xlu0 %v355
    %v357 = vpop.xlane.xlu0 %356
    %v358 = vadd.f32 %v174, %v175
    %359 = vadd.xlane.f32.xlu0 %v358
    %v360 = vpop.xlane.xlu0 %359
    %v361 = vadd.f32 %v176, %v177
    %362 = vadd.xlane.f32.xlu0 %v361
    %v363 = vpop.xlane.xlu0 %362
    %v364 = vadd.f32 %v178, %v179
    %365 = vadd.xlane.f32.xlu0 %v364
    %v366 = vpop.xlane.xlu0 %365
    %v367 = vadd.f32 %v180, %v181
    %368 = vadd.xlane.f32.xlu0 %v367
    %v369 = vpop.xlane.xlu0 %368
    %v370 = vadd.f32 %v182, %v183
    %371 = vadd.xlane.f32.xlu0 %v370
    %v372 = vpop.xlane.xlu0 %371
    %v373 = vadd.f32 %v184, %v185
    %374 = vadd.xlane.f32.xlu0 %v373
    %v375 = vpop.xlane.xlu0 %374
    %v376 = vadd.f32 %v186, %v187
    %377 = vadd.xlane.f32.xlu0 %v376
    %v378 = vpop.xlane.xlu0 %377
    %v379 = vadd.f32 %v188, %v189
    %380 = vadd.xlane.f32.xlu0 %v379
    %v381 = vpop.xlane.xlu0 %380
    %v382 = vadd.f32 %v190, %v191
    %383 = vadd.xlane.f32.xlu0 %v382
    %v384 = vpop.xlane.xlu0 %383
    %v449 = vlaneseq
    %v450 = vand.u32 %v449, 127
    %v451 = vlaneseq
    %v452 = vshrl.u32 %v451, 7
    %v453 = vsub.s32 %v450, %v452
    %v454 = vrot.slane %v195, %v453
    %v455 = vadd.s32 %v450, 4294967288
    %v456 = vlaneseq
    %v457 = vshrl.u32 %v456, 7
    %v458 = vsub.s32 %v455, %v457
    %v459 = vrot.slane %v198, %v458
    %vm460 = vcmask 130112
    %v461 = vsel %vm460, %v459, %v454
    %v462 = vadd.s32 %v450, 4294967280
    %v463 = vlaneseq
    %v464 = vshrl.u32 %v463, 7
    %v465 = vsub.s32 %v462, %v464
    %v466 = vrot.slane %v201, %v465
    %vm467 = vcmask 195712
    %v468 = vsel %vm467, %v466, %v461
    %v469 = vadd.s32 %v450, 4294967272
    %v470 = vlaneseq
    %v471 = vshrl.u32 %v470, 7
    %v472 = vsub.s32 %v469, %v471
    %v473 = vrot.slane %v204, %v472
    %vm474 = vcmask 261312
    %v475 = vsel %vm474, %v473, %v468
    %v476 = vadd.s32 %v450, 4294967264
    %v477 = vlaneseq
    %v478 = vshrl.u32 %v477, 7
    %v479 = vsub.s32 %v476, %v478
    %v480 = vrot.slane %v207, %v479
    %vm481 = vcmask 326912
    %v482 = vsel %vm481, %v480, %v475
    %v483 = vadd.s32 %v450, 4294967256
    %v484 = vlaneseq
    %v485 = vshrl.u32 %v484, 7
    %v486 = vsub.s32 %v483, %v485
    %v487 = vrot.slane %v210, %v486
    %vm488 = vcmask 392512
    %v489 = vsel %vm488, %v487, %v482
    %v490 = vadd.s32 %v450, 4294967248
    %v491 = vlaneseq
    %v492 = vshrl.u32 %v491, 7
    %v493 = vsub.s32 %v490, %v492
    %v494 = vrot.slane %v213, %v493
    %vm495 = vcmask 458112
    %v496 = vsel %vm495, %v494, %v489
    %v497 = vadd.s32 %v450, 4294967240
    %v498 = vlaneseq
    %v499 = vshrl.u32 %v498, 7
    %v500 = vsub.s32 %v497, %v499
    %v501 = vrot.slane %v216, %v500
    %vm502 = vcmask 523712
    %v503 = vsel %vm502, %v501, %v496
    %v504 = vadd.s32 %v450, 4294967232
    %v505 = vlaneseq
    %v506 = vshrl.u32 %v505, 7
    %v507 = vsub.s32 %v504, %v506
    %v508 = vrot.slane %v219, %v507
    %vm509 = vcmask 589312
    %v510 = vsel %vm509, %v508, %v503
    %v511 = vadd.s32 %v450, 4294967224
    %v512 = vlaneseq
    %v513 = vshrl.u32 %v512, 7
    %v514 = vsub.s32 %v511, %v513
    %v515 = vrot.slane %v222, %v514
    %vm516 = vcmask 654912
    %v517 = vsel %vm516, %v515, %v510
    %v518 = vadd.s32 %v450, 4294967216
    %v519 = vlaneseq
    %v520 = vshrl.u32 %v519, 7
    %v521 = vsub.s32 %v518, %v520
    %v522 = vrot.slane %v225, %v521
    %vm523 = vcmask 720512
    %v524 = vsel %vm523, %v522, %v517
    %v525 = vadd.s32 %v450, 4294967208
    %v526 = vlaneseq
    %v527 = vshrl.u32 %v526, 7
    %v528 = vsub.s32 %v525, %v527
    %v529 = vrot.slane %v228, %v528
    %vm530 = vcmask 786112
    %v531 = vsel %vm530, %v529, %v524
    %v532 = vadd.s32 %v450, 4294967200
    %v533 = vlaneseq
    %v534 = vshrl.u32 %v533, 7
    %v535 = vsub.s32 %v532, %v534
    %v536 = vrot.slane %v231, %v535
    %vm537 = vcmask 851712
    %v538 = vsel %vm537, %v536, %v531
    %v539 = vadd.s32 %v450, 4294967192
    %v540 = vlaneseq
    %v541 = vshrl.u32 %v540, 7
    %v542 = vsub.s32 %v539, %v541
    %v543 = vrot.slane %v234, %v542
    %vm544 = vcmask 917312
    %v545 = vsel %vm544, %v543, %v538
    %v546 = vadd.s32 %v450, 4294967184
    %v547 = vlaneseq
    %v548 = vshrl.u32 %v547, 7
    %v549 = vsub.s32 %v546, %v548
    %v550 = vrot.slane %v237, %v549
    %vm551 = vcmask 982912
    %v552 = vsel %vm551, %v550, %v545
    %v553 = vadd.s32 %v450, 4294967176
    %v554 = vlaneseq
    %v555 = vshrl.u32 %v554, 7
    %v556 = vsub.s32 %v553, %v555
    %v557 = vrot.slane %v240, %v556
    %vm558 = vcmask 1048512
    %v559 = vsel %vm558, %v557, %v552
    %v560 = vlaneseq
    %v561 = vshrl.u32 %v560, 7
    %v562 = vsub.s32 %v450, %v561
    %v563 = vrot.slane %v243, %v562
    %v564 = vlaneseq
    %v565 = vshrl.u32 %v564, 7
    %v566 = vsub.s32 %v455, %v565
    %v567 = vrot.slane %v246, %v566
    %v568 = vsel %vm460, %v567, %v563
    %v569 = vlaneseq
    %v570 = vshrl.u32 %v569, 7
    %v571 = vsub.s32 %v462, %v570
    %v572 = vrot.slane %v249, %v571
    %v573 = vsel %vm467, %v572, %v568
    %v574 = vlaneseq
    %v575 = vshrl.u32 %v574, 7
    %v576 = vsub.s32 %v469, %v575
    %v577 = vrot.slane %v252, %v576
    %v578 = vsel %vm474, %v577, %v573
    %v579 = vlaneseq
    %v580 = vshrl.u32 %v579, 7
    %v581 = vsub.s32 %v476, %v580
    %v582 = vrot.slane %v255, %v581
    %v583 = vsel %vm481, %v582, %v578
    %v584 = vlaneseq
    %v585 = vshrl.u32 %v584, 7
    %v586 = vsub.s32 %v483, %v585
    %v587 = vrot.slane %v258, %v586
    %v588 = vsel %vm488, %v587, %v583
    %v589 = vlaneseq
    %v590 = vshrl.u32 %v589, 7
    %v591 = vsub.s32 %v490, %v590
    %v592 = vrot.slane %v261, %v591
    %v593 = vsel %vm495, %v592, %v588
    %v594 = vlaneseq
    %v595 = vshrl.u32 %v594, 7
    %v596 = vsub.s32 %v497, %v595
    %v597 = vrot.slane %v264, %v596
    %v598 = vsel %vm502, %v597, %v593
    %v599 = vlaneseq
    %v600 = vshrl.u32 %v599, 7
    %v601 = vsub.s32 %v504, %v600
    %v602 = vrot.slane %v267, %v601
    %v603 = vsel %vm509, %v602, %v598
    %v604 = vlaneseq
    %v605 = vshrl.u32 %v604, 7
    %v606 = vsub.s32 %v511, %v605
    %v607 = vrot.slane %v270, %v606
    %v608 = vsel %vm516, %v607, %v603
    %v609 = vlaneseq
    %v610 = vshrl.u32 %v609, 7
    %v611 = vsub.s32 %v518, %v610
    %v612 = vrot.slane %v273, %v611
    %v613 = vsel %vm523, %v612, %v608
    %v614 = vlaneseq
    %v615 = vshrl.u32 %v614, 7
    %v616 = vsub.s32 %v525, %v615
    %v617 = vrot.slane %v276, %v616
    %v618 = vsel %vm530, %v617, %v613
    %v619 = vlaneseq
    %v620 = vshrl.u32 %v619, 7
    %v621 = vsub.s32 %v532, %v620
    %v622 = vrot.slane %v279, %v621
    %v623 = vsel %vm537, %v622, %v618
    %v624 = vlaneseq
    %v625 = vshrl.u32 %v624, 7
    %v626 = vsub.s32 %v539, %v625
    %v627 = vrot.slane %v282, %v626
    %v628 = vsel %vm544, %v627, %v623
    %v629 = vlaneseq
    %v630 = vshrl.u32 %v629, 7
    %v631 = vsub.s32 %v546, %v630
    %v632 = vrot.slane %v285, %v631
    %v633 = vsel %vm551, %v632, %v628
    %v634 = vlaneseq
    %v635 = vshrl.u32 %v634, 7
    %v636 = vsub.s32 %v553, %v635
    %v637 = vrot.slane %v288, %v636
    %v638 = vsel %vm558, %v637, %v633
    %v639 = vlaneseq
    %v640 = vshrl.u32 %v639, 7
    %v641 = vsub.s32 %v450, %v640
    %v642 = vrot.slane %v291, %v641
    %v643 = vlaneseq
    %v644 = vshrl.u32 %v643, 7
    %v645 = vsub.s32 %v455, %v644
    %v646 = vrot.slane %v294, %v645
    %v647 = vsel %vm460, %v646, %v642
    %v648 = vlaneseq
    %v649 = vshrl.u32 %v648, 7
    %v650 = vsub.s32 %v462, %v649
    %v651 = vrot.slane %v297, %v650
    %v652 = vsel %vm467, %v651, %v647
    %v653 = vlaneseq
    %v654 = vshrl.u32 %v653, 7
    %v655 = vsub.s32 %v469, %v654
    %v656 = vrot.slane %v300, %v655
    %v657 = vsel %vm474, %v656, %v652
    %v658 = vlaneseq
    %v659 = vshrl.u32 %v658, 7
    %v660 = vsub.s32 %v476, %v659
    %v661 = vrot.slane %v303, %v660
    %v662 = vsel %vm481, %v661, %v657
    %v663 = vlaneseq
    %v664 = vshrl.u32 %v663, 7
    %v665 = vsub.s32 %v483, %v664
    %v666 = vrot.slane %v306, %v665
    %v667 = vsel %vm488, %v666, %v662
    %v668 = vlaneseq
    %v669 = vshrl.u32 %v668, 7
    %v670 = vsub.s32 %v490, %v669
    %v671 = vrot.slane %v309, %v670
    %v672 = vsel %vm495, %v671, %v667
    %v673 = vlaneseq
    %v674 = vshrl.u32 %v673, 7
    %v675 = vsub.s32 %v497, %v674
    %v676 = vrot.slane %v312, %v675
    %v677 = vsel %vm502, %v676, %v672
    %v678 = vlaneseq
    %v679 = vshrl.u32 %v678, 7
    %v680 = vsub.s32 %v504, %v679
    %v681 = vrot.slane %v315, %v680
    %v682 = vsel %vm509, %v681, %v677
    %v683 = vlaneseq
    %v684 = vshrl.u32 %v683, 7
    %v685 = vsub.s32 %v511, %v684
    %v686 = vrot.slane %v318, %v685
    %v687 = vsel %vm516, %v686, %v682
    %v688 = vlaneseq
    %v689 = vshrl.u32 %v688, 7
    %v690 = vsub.s32 %v518, %v689
    %v691 = vrot.slane %v321, %v690
    %v692 = vsel %vm523, %v691, %v687
    %v693 = vlaneseq
    %v694 = vshrl.u32 %v693, 7
    %v695 = vsub.s32 %v525, %v694
    %v696 = vrot.slane %v324, %v695
    %v697 = vsel %vm530, %v696, %v692
    %v698 = vlaneseq
    %v699 = vshrl.u32 %v698, 7
    %v700 = vsub.s32 %v532, %v699
    %v701 = vrot.slane %v327, %v700
    %v702 = vsel %vm537, %v701, %v697
    %v703 = vlaneseq
    %v704 = vshrl.u32 %v703, 7
    %v705 = vsub.s32 %v539, %v704
    %v706 = vrot.slane %v330, %v705
    %v707 = vsel %vm544, %v706, %v702
    %v708 = vlaneseq
    %v709 = vshrl.u32 %v708, 7
    %v710 = vsub.s32 %v546, %v709
    %v711 = vrot.slane %v333, %v710
    %v712 = vsel %vm551, %v711, %v707
    %v713 = vlaneseq
    %v714 = vshrl.u32 %v713, 7
    %v715 = vsub.s32 %v553, %v714
    %v716 = vrot.slane %v336, %v715
    %v717 = vsel %vm558, %v716, %v712
    %v718 = vlaneseq
    %v719 = vshrl.u32 %v718, 7
    %v720 = vsub.s32 %v450, %v719
    %v721 = vrot.slane %v339, %v720
    %v722 = vlaneseq
    %v723 = vshrl.u32 %v722, 7
    %v724 = vsub.s32 %v455, %v723
    %v725 = vrot.slane %v342, %v724
    %v726 = vsel %vm460, %v725, %v721
    %v727 = vlaneseq
    %v728 = vshrl.u32 %v727, 7
    %v729 = vsub.s32 %v462, %v728
    %v730 = vrot.slane %v345, %v729
    %v731 = vsel %vm467, %v730, %v726
    %v732 = vlaneseq
    %v733 = vshrl.u32 %v732, 7
    %v734 = vsub.s32 %v469, %v733
    %v735 = vrot.slane %v348, %v734
    %v736 = vsel %vm474, %v735, %v731
    %v737 = vlaneseq
    %v738 = vshrl.u32 %v737, 7
    %v739 = vsub.s32 %v476, %v738
    %v740 = vrot.slane %v351, %v739
    %v741 = vsel %vm481, %v740, %v736
    %v742 = vlaneseq
    %v743 = vshrl.u32 %v742, 7
    %v744 = vsub.s32 %v483, %v743
    %v745 = vrot.slane %v354, %v744
    %v746 = vsel %vm488, %v745, %v741
    %v747 = vlaneseq
    %v748 = vshrl.u32 %v747, 7
    %v749 = vsub.s32 %v490, %v748
    %v750 = vrot.slane %v357, %v749
    %v751 = vsel %vm495, %v750, %v746
    %v752 = vlaneseq
    %v753 = vshrl.u32 %v752, 7
    %v754 = vsub.s32 %v497, %v753
    %v755 = vrot.slane %v360, %v754
    %v756 = vsel %vm502, %v755, %v751
    %v757 = vlaneseq
    %v758 = vshrl.u32 %v757, 7
    %v759 = vsub.s32 %v504, %v758
    %v760 = vrot.slane %v363, %v759
    %v761 = vsel %vm509, %v760, %v756
    %v762 = vlaneseq
    %v763 = vshrl.u32 %v762, 7
    %v764 = vsub.s32 %v511, %v763
    %v765 = vrot.slane %v366, %v764
    %v766 = vsel %vm516, %v765, %v761
    %v767 = vlaneseq
    %v768 = vshrl.u32 %v767, 7
    %v769 = vsub.s32 %v518, %v768
    %v770 = vrot.slane %v369, %v769
    %v771 = vsel %vm523, %v770, %v766
    %v772 = vlaneseq
    %v773 = vshrl.u32 %v772, 7
    %v774 = vsub.s32 %v525, %v773
    %v775 = vrot.slane %v372, %v774
    %v776 = vsel %vm530, %v775, %v771
    %v777 = vlaneseq
    %v778 = vshrl.u32 %v777, 7
    %v779 = vsub.s32 %v532, %v778
    %v780 = vrot.slane %v375, %v779
    %v781 = vsel %vm537, %v780, %v776
    %v782 = vlaneseq
    %v783 = vshrl.u32 %v782, 7
    %v784 = vsub.s32 %v539, %v783
    %v785 = vrot.slane %v378, %v784
    %v786 = vsel %vm544, %v785, %v781
    %v787 = vlaneseq
    %v788 = vshrl.u32 %v787, 7
    %v789 = vsub.s32 %v546, %v788
    %v790 = vrot.slane %v381, %v789
    %v791 = vsel %vm551, %v790, %v786
    %v792 = vlaneseq
    %v793 = vshrl.u32 %v792, 7
    %v794 = vsub.s32 %v553, %v793
    %v795 = vrot.slane %v384, %v794
    %v796 = vsel %vm558, %v795, %v791
    %vm797 = vcmask 1041409
    %v798 = vsel %vm797, %v638, %v559
    %vm799 = vcmask 1042434
    %v800 = vsel %vm799, %v717, %v798
    %vm801 = vcmask 1043459
    %v802 = vsel %vm801, %v796, %v800
    %v804 = vadd.f32 %v192, %v802
    %805 = vst [vmem:[#allocation2] sm:$0xf] %v804
    // Predicated region
    $region54: #{tpu_custom_call.1} parent=1 // pred_check
      %p806 = pneg %p59
    $region55: #{tpu_custom_call.1} parent=1 // pred_check_branch
      %808 = sbr.rel (%p806) target = $region57
    $region56: #{tpu_custom_call.1} parent=1 // pred_region
      %v809 = vld [vmem:[#allocation2] sm:$0xf]
      %v810 = vld [vmem:[%s1] sm:$0xff]
      %v811 = vld [vmem:[%s1 + $0x8] sm:$0xff]
      %v812 = vld [vmem:[%s1 + $0x10] sm:$0xff]
      %v813 = vld [vmem:[%s1 + $0x18] sm:$0xff]
      %v814 = vld [vmem:[%s2] sm:$0xff]
      %v815 = vld [vmem:[%s2 + $0x8] sm:$0xff]
      %v816 = vld [vmem:[%s2 + $0x10] sm:$0xff]
      %v817 = vld [vmem:[%s2 + $0x18] sm:$0xff]
      %819 = vset.pattern.permute.xlu0 0
      %820 = vperm.xlu0 %819, %v814
      %v821 = vpop.permute.xlu0 %820
      %824 = vset.pattern.permute.xlu0 0
      %825 = vperm.xlu0 %824, %v815
      %v826 = vpop.permute.xlu0 %825
      %829 = vset.pattern.permute.xlu0 0
      %830 = vperm.xlu0 %829, %v816
      %v831 = vpop.permute.xlu0 %830
      %834 = vset.pattern.permute.xlu0 0
      %835 = vperm.xlu0 %834, %v817
      %v836 = vpop.permute.xlu0 %835
      %vm838 = vcmask 31744
      %v840 = vsel %vm838, %v810, 0
      %v843 = vsel %vm838, %v811, 0
      %v846 = vsel %vm838, %v812, 0
      %v849 = vsel %vm838, %v813, 0
      %vm851 = vcmask 1043456
      %v853 = vsel %vm851, %v809, 0
      %855 = vmatprep.subr.mxu0 0.0
      %856 = vmatpush1.msra.mxu0 0.0
      %857 = vmatprep.subr.mxu0 0.0
      %858 = vmatpush1.msra.mxu0 0.0
      %859 = vmatprep.subr.mxu0 0.0
      %860 = vmatpush1.msra.mxu0 0.0
      %861 = vmatprep.subr.mxu0 0.0
      %862 = vmatpush1.msra.mxu0 0.0
      %863 = vmatprep.subr.mxu0 0.0
      %864 = vmatpush1.msra.mxu0 0.0
      %865 = vmatprep.subr.mxu0 0.0
      %866 = vmatpush1.msra.mxu0 0.0
      %867 = vmatprep.subr.mxu0 0.0
      %868 = vmatpush1.msra.mxu0 0.0
      %869 = vmatprep.subr.mxu0 0.0
      %870 = vmatpush1.msra.mxu0 0.0
      %871 = vmatprep.subr.mxu0 0.0
      %872 = vmatpush1.msra.mxu0 0.0
      %873 = vmatprep.subr.mxu0 0.0
      %874 = vmatpush1.msra.mxu0 0.0
      %875 = vmatprep.subr.mxu0 0.0
      %876 = vmatpush1.msra.mxu0 0.0
      %877 = vmatprep.subr.mxu0 0.0
      %878 = vmatpush1.msra.mxu0 0.0
      %879 = vmatprep.subr.mxu0 0.0
      %880 = vmatpush1.msra.mxu0 0.0
      %881 = vmatprep.subr.mxu0 0.0
      %882 = vmatpush1.msra.mxu0 0.0
      %883 = vmatprep.subr.mxu0 0.0
      %884 = vmatpush1.msra.mxu0 0.0
      %885 = vmatprep.subr.mxu0 0.0
      %886 = vmatpush1.msra.mxu0 %v853
      %887 = vmatprep.subr.mxu0 0.0
      %888 = vmatpush2.msra.mxu0 0.0
      %889 = vmatprep.subr.mxu0 0.0
      %890 = vmatpush2.msra.mxu0 0.0
      %891 = vmatprep.subr.mxu0 0.0
      %892 = vmatpush2.msra.mxu0 0.0
      %893 = vmatprep.subr.mxu0 0.0
      %894 = vmatpush2.msra.mxu0 0.0
      %895 = vmatprep.subr.mxu0 0.0
      %896 = vmatpush2.msra.mxu0 0.0
      %897 = vmatprep.subr.mxu0 0.0
      %898 = vmatpush2.msra.mxu0 0.0
      %899 = vmatprep.subr.mxu0 0.0
      %900 = vmatpush2.msra.mxu0 0.0
      %901 = vmatprep.subr.mxu0 0.0
      %902 = vmatpush2.msra.mxu0 0.0
      %903 = vmatprep.subr.mxu0 0.0
      %904 = vmatpush2.msra.mxu0 0.0
      %905 = vmatprep.subr.mxu0 0.0
      %906 = vmatpush2.msra.mxu0 0.0
      %907 = vmatprep.subr.mxu0 0.0
      %908 = vmatpush2.msra.mxu0 0.0
      %909 = vmatprep.subr.mxu0 0.0
      %910 = vmatpush2.msra.mxu0 0.0
      %911 = vmatprep.subr.mxu0 0.0
      %912 = vmatpush2.msra.mxu0 0.0
      %913 = vmatprep.subr.mxu0 0.0
      %914 = vmatpush2.msra.mxu0 0.0
      %915 = vmatprep.subr.mxu0 0.0
      %916 = vmatpush2.msra.mxu0 0.0
      %917 = vmatprep.subr.mxu0 0.0
      %918 = vmatpush2.msra.mxu0 0.0
      %919 = vmatprep.mubr.f32.mxu0 0.0
      %920 = vmatmul.mubr.f32.gmra.mxu0 %v840
      %v921 = vpop.f32.mrf.mxu0
      %v922 = vadd.f32 %v821, %v921
      %v923 = vpop.f32.mrf.mxu0
      %924 = vmatprep.mubr.f32.mxu0 0.0
      %925 = vmatmul.mubr.f32.gmra.mxu0 %v843
      %v926 = vpop.f32.mrf.mxu0
      %v927 = vadd.f32 %v826, %v926
      %v928 = vpop.f32.mrf.mxu0
      %929 = vmatprep.mubr.f32.mxu0 0.0
      %930 = vmatmul.mubr.f32.gmra.mxu0 %v846
      %v931 = vpop.f32.mrf.mxu0
      %v932 = vadd.f32 %v831, %v931
      %v933 = vpop.f32.mrf.mxu0
      %934 = vmatprep.mubr.f32.mxu0 0.0
      %935 = vmatmul.mubr.f32.gmra.mxu0 %v849
      %v936 = vpop.f32.mrf.mxu0
      %v937 = vadd.f32 %v836, %v936
      %v938 = vpop.f32.mrf.mxu0
      %939 = vdwg.mxu0
      %v940 = vld [vmem:[%s3] sm:$0xff]
      %v941 = vld [vmem:[%s3 + $0x8] sm:$0xff]
      %v942 = vld [vmem:[%s3 + $0x10] sm:$0xff]
      %v943 = vld [vmem:[%s3 + $0x18] sm:$0xff]
      %v944 = vld [vmem:[%s3 + $0x20] sm:$0xff]
      %v945 = vld [vmem:[%s3 + $0x28] sm:$0xff]
      %v946 = vld [vmem:[%s3 + $0x30] sm:$0xff]
      %v947 = vld [vmem:[%s3 + $0x38] sm:$0xff]
      %v948 = vld [vmem:[%s3 + $0x40] sm:$0xff]
      %v949 = vld [vmem:[%s3 + $0x48] sm:$0xff]
      %v950 = vld [vmem:[%s3 + $0x50] sm:$0xff]
      %v951 = vld [vmem:[%s3 + $0x58] sm:$0xff]
      %v952 = vld [vmem:[%s3 + $0x60] sm:$0xff]
      %v953 = vld [vmem:[%s3 + $0x68] sm:$0xff]
      %v954 = vld [vmem:[%s3 + $0x70] sm:$0xff]
      %v955 = vld [vmem:[%s3 + $0x78] sm:$0xff]
      %v956 = vld [vmem:[%s3 + $0x80] sm:$0xff]
      %v957 = vld [vmem:[%s3 + $0x88] sm:$0xff]
      %v958 = vld [vmem:[%s3 + $0x90] sm:$0xff]
      %v959 = vld [vmem:[%s3 + $0x98] sm:$0xff]
      %v960 = vld [vmem:[%s3 + $0xa0] sm:$0xff]
      %v961 = vld [vmem:[%s3 + $0xa8] sm:$0xff]
      %v962 = vld [vmem:[%s3 + $0xb0] sm:$0xff]
      %v963 = vld [vmem:[%s3 + $0xb8] sm:$0xff]
      %v964 = vld [vmem:[%s3 + $0xc0] sm:$0xff]
      %v965 = vld [vmem:[%s3 + $0xc8] sm:$0xff]
      %v966 = vld [vmem:[%s3 + $0xd0] sm:$0xff]
      %v967 = vld [vmem:[%s3 + $0xd8] sm:$0xff]
      %v968 = vld [vmem:[%s3 + $0xe0] sm:$0xff]
      %v969 = vld [vmem:[%s3 + $0xe8] sm:$0xff]
      %v970 = vld [vmem:[%s3 + $0xf0] sm:$0xff]
      %v971 = vld [vmem:[%s3 + $0xf8] sm:$0xff]
      %v972 = vld [vmem:[%s4] sm:$0xff]
      %v973 = vld [vmem:[%s4 + $0x8] sm:$0xff]
      %v974 = vld [vmem:[%s4 + $0x10] sm:$0xff]
      %v975 = vld [vmem:[%s4 + $0x18] sm:$0xff]
      %v976 = vld [vmem:[%s4 + $0x20] sm:$0xff]
      %v977 = vld [vmem:[%s4 + $0x28] sm:$0xff]
      %v978 = vld [vmem:[%s4 + $0x30] sm:$0xff]
      %v979 = vld [vmem:[%s4 + $0x38] sm:$0xff]
      %v980 = vld [vmem:[%s4 + $0x40] sm:$0xff]
      %v981 = vld [vmem:[%s4 + $0x48] sm:$0xff]
      %v982 = vld [vmem:[%s4 + $0x50] sm:$0xff]
      %v983 = vld [vmem:[%s4 + $0x58] sm:$0xff]
      %v984 = vld [vmem:[%s4 + $0x60] sm:$0xff]
      %v985 = vld [vmem:[%s4 + $0x68] sm:$0xff]
      %v986 = vld [vmem:[%s4 + $0x70] sm:$0xff]
      %v987 = vld [vmem:[%s4 + $0x78] sm:$0xff]
      %v988 = vld [vmem:[%s4 + $0x80] sm:$0xff]
      %v989 = vld [vmem:[%s4 + $0x88] sm:$0xff]
      %v990 = vld [vmem:[%s4 + $0x90] sm:$0xff]
      %v991 = vld [vmem:[%s4 + $0x98] sm:$0xff]
      %v992 = vld [vmem:[%s4 + $0xa0] sm:$0xff]
      %v993 = vld [vmem:[%s4 + $0xa8] sm:$0xff]
      %v994 = vld [vmem:[%s4 + $0xb0] sm:$0xff]
      %v995 = vld [vmem:[%s4 + $0xb8] sm:$0xff]
      %v996 = vld [vmem:[%s4 + $0xc0] sm:$0xff]
      %v997 = vld [vmem:[%s4 + $0xc8] sm:$0xff]
      %v998 = vld [vmem:[%s4 + $0xd0] sm:$0xff]
      %v999 = vld [vmem:[%s4 + $0xd8] sm:$0xff]
      %v1000 = vld [vmem:[%s4 + $0xe0] sm:$0xff]
      %v1001 = vld [vmem:[%s4 + $0xe8] sm:$0xff]
      %v1002 = vld [vmem:[%s4 + $0xf0] sm:$0xff]
      %v1003 = vld [vmem:[%s4 + $0xf8] sm:$0xff]
      %1005 = vset.pattern.permute.xlu0 0
      %1006 = vperm.xlu0 %1005, %v972
      %v1007 = vpop.permute.xlu0 %1006
      %1010 = vset.pattern.permute.xlu0 0
      %1011 = vperm.xlu0 %1010, %v973
      %v1012 = vpop.permute.xlu0 %1011
      %1015 = vset.pattern.permute.xlu0 0
      %1016 = vperm.xlu0 %1015, %v974
      %v1017 = vpop.permute.xlu0 %1016
      %1020 = vset.pattern.permute.xlu0 0
      %1021 = vperm.xlu0 %1020, %v975
      %v1022 = vpop.permute.xlu0 %1021
      %1025 = vset.pattern.permute.xlu0 0
      %1026 = vperm.xlu0 %1025, %v976
      %v1027 = vpop.permute.xlu0 %1026
      %1030 = vset.pattern.permute.xlu0 0
      %1031 = vperm.xlu0 %1030, %v977
      %v1032 = vpop.permute.xlu0 %1031
      %1035 = vset.pattern.permute.xlu0 0
      %1036 = vperm.xlu0 %1035, %v978
      %v1037 = vpop.permute.xlu0 %1036
      %1040 = vset.pattern.permute.xlu0 0
      %1041 = vperm.xlu0 %1040, %v979
      %v1042 = vpop.permute.xlu0 %1041
      %1045 = vset.pattern.permute.xlu0 0
      %1046 = vperm.xlu0 %1045, %v980
      %v1047 = vpop.permute.xlu0 %1046
      %1050 = vset.pattern.permute.xlu0 0
      %1051 = vperm.xlu0 %1050, %v981
      %v1052 = vpop.permute.xlu0 %1051
      %1055 = vset.pattern.permute.xlu0 0
      %1056 = vperm.xlu0 %1055, %v982
      %v1057 = vpop.permute.xlu0 %1056
      %1060 = vset.pattern.permute.xlu0 0
      %1061 = vperm.xlu0 %1060, %v983
      %v1062 = vpop.permute.xlu0 %1061
      %1065 = vset.pattern.permute.xlu0 0
      %1066 = vperm.xlu0 %1065, %v984
      %v1067 = vpop.permute.xlu0 %1066
      %1070 = vset.pattern.permute.xlu0 0
      %1071 = vperm.xlu0 %1070, %v985
      %v1072 = vpop.permute.xlu0 %1071
      %1075 = vset.pattern.permute.xlu0 0
      %1076 = vperm.xlu0 %1075, %v986
      %v1077 = vpop.permute.xlu0 %1076
      %1080 = vset.pattern.permute.xlu0 0
      %1081 = vperm.xlu0 %1080, %v987
      %v1082 = vpop.permute.xlu0 %1081
      %1085 = vset.pattern.permute.xlu0 0
      %1086 = vperm.xlu0 %1085, %v988
      %v1087 = vpop.permute.xlu0 %1086
      %1090 = vset.pattern.permute.xlu0 0
      %1091 = vperm.xlu0 %1090, %v989
      %v1092 = vpop.permute.xlu0 %1091
      %1095 = vset.pattern.permute.xlu0 0
      %1096 = vperm.xlu0 %1095, %v990
      %v1097 = vpop.permute.xlu0 %1096
      %1100 = vset.pattern.permute.xlu0 0
      %1101 = vperm.xlu0 %1100, %v991
      %v1102 = vpop.permute.xlu0 %1101
      %1105 = vset.pattern.permute.xlu0 0
      %1106 = vperm.xlu0 %1105, %v992
      %v1107 = vpop.permute.xlu0 %1106
      %1110 = vset.pattern.permute.xlu0 0
      %1111 = vperm.xlu0 %1110, %v993
      %v1112 = vpop.permute.xlu0 %1111
      %1115 = vset.pattern.permute.xlu0 0
      %1116 = vperm.xlu0 %1115, %v994
      %v1117 = vpop.permute.xlu0 %1116
      %1120 = vset.pattern.permute.xlu0 0
      %1121 = vperm.xlu0 %1120, %v995
      %v1122 = vpop.permute.xlu0 %1121
      %1125 = vset.pattern.permute.xlu0 0
      %1126 = vperm.xlu0 %1125, %v996
      %v1127 = vpop.permute.xlu0 %1126
      %1130 = vset.pattern.permute.xlu0 0
      %1131 = vperm.xlu0 %1130, %v997
      %v1132 = vpop.permute.xlu0 %1131
      %1135 = vset.pattern.permute.xlu0 0
      %1136 = vperm.xlu0 %1135, %v998
      %v1137 = vpop.permute.xlu0 %1136
      %1140 = vset.pattern.permute.xlu0 0
      %1141 = vperm.xlu0 %1140, %v999
      %v1142 = vpop.permute.xlu0 %1141
      %1145 = vset.pattern.permute.xlu0 0
      %1146 = vperm.xlu0 %1145, %v1000
      %v1147 = vpop.permute.xlu0 %1146
      %1150 = vset.pattern.permute.xlu0 0
      %1151 = vperm.xlu0 %1150, %v1001
      %v1152 = vpop.permute.xlu0 %1151
      %1155 = vset.pattern.permute.xlu0 0
      %1156 = vperm.xlu0 %1155, %v1002
      %v1157 = vpop.permute.xlu0 %1156
      %1160 = vset.pattern.permute.xlu0 0
      %1161 = vperm.xlu0 %1160, %v1003
      %v1162 = vpop.permute.xlu0 %1161
      %vm1164 = vcmask 261120
      %v1166 = vsel %vm1164, %v940, 0
      %v1169 = vsel %vm1164, %v941, 0
      %v1172 = vsel %vm1164, %v942, 0
      %v1175 = vsel %vm1164, %v943, 0
      %v1178 = vsel %vm1164, %v944, 0
      %v1181 = vsel %vm1164, %v945, 0
      %v1184 = vsel %vm1164, %v946, 0
      %v1187 = vsel %vm1164, %v947, 0
      %v1190 = vsel %vm1164, %v948, 0
      %v1193 = vsel %vm1164, %v949, 0
      %v1196 = vsel %vm1164, %v950, 0
      %v1199 = vsel %vm1164, %v951, 0
      %v1202 = vsel %vm1164, %v952, 0
      %v1205 = vsel %vm1164, %v953, 0
      %v1208 = vsel %vm1164, %v954, 0
      %v1211 = vsel %vm1164, %v955, 0
      %v1214 = vsel %vm1164, %v956, 0
      %v1217 = vsel %vm1164, %v957, 0
      %v1220 = vsel %vm1164, %v958, 0
      %v1223 = vsel %vm1164, %v959, 0
      %v1226 = vsel %vm1164, %v960, 0
      %v1229 = vsel %vm1164, %v961, 0
      %v1232 = vsel %vm1164, %v962, 0
      %v1235 = vsel %vm1164, %v963, 0
      %v1238 = vsel %vm1164, %v964, 0
      %v1241 = vsel %vm1164, %v965, 0
      %v1244 = vsel %vm1164, %v966, 0
      %v1247 = vsel %vm1164, %v967, 0
      %v1250 = vsel %vm1164, %v968, 0
      %v1253 = vsel %vm1164, %v969, 0
      %v1256 = vsel %vm1164, %v970, 0
      %v1259 = vsel %vm1164, %v971, 0
      %1261 = vmatprep.subr.mxu0 0.0
      %1262 = vmatpush1.msra.mxu0 0.0
      %1263 = vmatprep.subr.mxu0 0.0
      %1264 = vmatpush1.msra.mxu0 0.0
      %1265 = vmatprep.subr.mxu0 0.0
      %1266 = vmatpush1.msra.mxu0 0.0
      %1267 = vmatprep.subr.mxu0 0.0
      %1268 = vmatpush1.msra.mxu0 0.0
      %1269 = vmatprep.subr.mxu0 0.0
      %1270 = vmatpush1.msra.mxu0 0.0
      %1271 = vmatprep.subr.mxu0 0.0
      %1272 = vmatpush1.msra.mxu0 0.0
      %1273 = vmatprep.subr.mxu0 0.0
      %1274 = vmatpush1.msra.mxu0 0.0
      %1275 = vmatprep.subr.mxu0 0.0
      %1276 = vmatpush1.msra.mxu0 0.0
      %1277 = vmatprep.subr.mxu0 0.0
      %1278 = vmatpush1.msra.mxu0 0.0
      %1279 = vmatprep.subr.mxu0 0.0
      %1280 = vmatpush1.msra.mxu0 0.0
      %1281 = vmatprep.subr.mxu0 0.0
      %1282 = vmatpush1.msra.mxu0 0.0
      %1283 = vmatprep.subr.mxu0 0.0
      %1284 = vmatpush1.msra.mxu0 0.0
      %1285 = vmatprep.subr.mxu0 0.0
      %1286 = vmatpush1.msra.mxu0 %v937
      %1287 = vmatprep.subr.mxu0 0.0
      %1288 = vmatpush1.msra.mxu0 %v932
      %1289 = vmatprep.subr.mxu0 0.0
      %1290 = vmatpush1.msra.mxu0 %v927
      %1291 = vmatprep.subr.mxu0 0.0
      %1292 = vmatpush1.msra.mxu0 %v922
      %1293 = vmatprep.subr.mxu0 0.0
      %1294 = vmatpush2.msra.mxu0 0.0
      %1295 = vmatprep.subr.mxu0 0.0
      %1296 = vmatpush2.msra.mxu0 0.0
      %1297 = vmatprep.subr.mxu0 0.0
      %1298 = vmatpush2.msra.mxu0 0.0
      %1299 = vmatprep.subr.mxu0 0.0
      %1300 = vmatpush2.msra.mxu0 0.0
      %1301 = vmatprep.subr.mxu0 0.0
      %1302 = vmatpush2.msra.mxu0 0.0
      %1303 = vmatprep.subr.mxu0 0.0
      %1304 = vmatpush2.msra.mxu0 0.0
      %1305 = vmatprep.subr.mxu0 0.0
      %1306 = vmatpush2.msra.mxu0 0.0
      %1307 = vmatprep.subr.mxu0 0.0
      %1308 = vmatpush2.msra.mxu0 0.0
      %1309 = vmatprep.subr.mxu0 0.0
      %1310 = vmatpush2.msra.mxu0 0.0
      %1311 = vmatprep.subr.mxu0 0.0
      %1312 = vmatpush2.msra.mxu0 0.0
      %1313 = vmatprep.subr.mxu0 0.0
      %1314 = vmatpush2.msra.mxu0 0.0
      %1315 = vmatprep.subr.mxu0 0.0
      %1316 = vmatpush2.msra.mxu0 0.0
      %1317 = vmatprep.subr.mxu0 0.0
      %1318 = vmatpush2.msra.mxu0 0.0
      %1319 = vmatprep.subr.mxu0 0.0
      %1320 = vmatpush2.msra.mxu0 0.0
      %1321 = vmatprep.subr.mxu0 0.0
      %1322 = vmatpush2.msra.mxu0 0.0
      %1323 = vmatprep.subr.mxu0 0.0
      %1324 = vmatpush2.msra.mxu0 0.0
      %1325 = vmatprep.mubr.f32.mxu0 0.0
      %1326 = vmatmul.mubr.f32.gmra.mxu0 %v1166
      %v1327 = vpop.f32.mrf.mxu0
      %v1328 = vadd.f32 %v1007, %v1327
      %v1329 = vpop.f32.mrf.mxu0
      %1330 = vmatprep.mubr.f32.mxu0 0.0
      %1331 = vmatmul.mubr.f32.gmra.mxu0 %v1169
      %v1332 = vpop.f32.mrf.mxu0
      %v1333 = vadd.f32 %v1012, %v1332
      %v1334 = vpop.f32.mrf.mxu0
      %1335 = vmatprep.mubr.f32.mxu0 0.0
      %1336 = vmatmul.mubr.f32.gmra.mxu0 %v1172
      %v1337 = vpop.f32.mrf.mxu0
      %v1338 = vadd.f32 %v1017, %v1337
      %v1339 = vpop.f32.mrf.mxu0
      %1340 = vmatprep.mubr.f32.mxu0 0.0
      %1341 = vmatmul.mubr.f32.gmra.mxu0 %v1175
      %v1342 = vpop.f32.mrf.mxu0
      %v1343 = vadd.f32 %v1022, %v1342
      %v1344 = vpop.f32.mrf.mxu0
      %1345 = vmatprep.mubr.f32.mxu0 0.0
      %1346 = vmatmul.mubr.f32.gmra.mxu0 %v1178
      %v1347 = vpop.f32.mrf.mxu0
      %v1348 = vadd.f32 %v1027, %v1347
      %v1349 = vpop.f32.mrf.mxu0
      %1350 = vmatprep.mubr.f32.mxu0 0.0
      %1351 = vmatmul.mubr.f32.gmra.mxu0 %v1181
      %v1352 = vpop.f32.mrf.mxu0
      %v1353 = vadd.f32 %v1032, %v1352
      %v1354 = vpop.f32.mrf.mxu0
      %1355 = vmatprep.mubr.f32.mxu0 0.0
      %1356 = vmatmul.mubr.f32.gmra.mxu0 %v1184
      %v1357 = vpop.f32.mrf.mxu0
      %v1358 = vadd.f32 %v1037, %v1357
      %v1359 = vpop.f32.mrf.mxu0
      %1360 = vmatprep.mubr.f32.mxu0 0.0
      %1361 = vmatmul.mubr.f32.gmra.mxu0 %v1187
      %v1362 = vpop.f32.mrf.mxu0
      %v1363 = vadd.f32 %v1042, %v1362
      %v1364 = vpop.f32.mrf.mxu0
      %1365 = vmatprep.mubr.f32.mxu0 0.0
      %1366 = vmatmul.mubr.f32.gmra.mxu0 %v1190
      %v1367 = vpop.f32.mrf.mxu0
      %v1368 = vadd.f32 %v1047, %v1367
      %v1369 = vpop.f32.mrf.mxu0
      %1370 = vmatprep.mubr.f32.mxu0 0.0
      %1371 = vmatmul.mubr.f32.gmra.mxu0 %v1193
      %v1372 = vpop.f32.mrf.mxu0
      %v1373 = vadd.f32 %v1052, %v1372
      %v1374 = vpop.f32.mrf.mxu0
      %1375 = vmatprep.mubr.f32.mxu0 0.0
      %1376 = vmatmul.mubr.f32.gmra.mxu0 %v1196
      %v1377 = vpop.f32.mrf.mxu0
      %v1378 = vadd.f32 %v1057, %v1377
      %v1379 = vpop.f32.mrf.mxu0
      %1380 = vmatprep.mubr.f32.mxu0 0.0
      %1381 = vmatmul.mubr.f32.gmra.mxu0 %v1199
      %v1382 = vpop.f32.mrf.mxu0
      %v1383 = vadd.f32 %v1062, %v1382
      %v1384 = vpop.f32.mrf.mxu0
      %1385 = vmatprep.mubr.f32.mxu0 0.0
      %1386 = vmatmul.mubr.f32.gmra.mxu0 %v1202
      %v1387 = vpop.f32.mrf.mxu0
      %v1388 = vadd.f32 %v1067, %v1387
      %v1389 = vpop.f32.mrf.mxu0
      %1390 = vmatprep.mubr.f32.mxu0 0.0
      %1391 = vmatmul.mubr.f32.gmra.mxu0 %v1205
      %v1392 = vpop.f32.mrf.mxu0
      %v1393 = vadd.f32 %v1072, %v1392
      %v1394 = vpop.f32.mrf.mxu0
      %1395 = vmatprep.mubr.f32.mxu0 0.0
      %1396 = vmatmul.mubr.f32.gmra.mxu0 %v1208
      %v1397 = vpop.f32.mrf.mxu0
      %v1398 = vadd.f32 %v1077, %v1397
      %v1399 = vpop.f32.mrf.mxu0
      %1400 = vmatprep.mubr.f32.mxu0 0.0
      %1401 = vmatmul.mubr.f32.gmra.mxu0 %v1211
      %v1402 = vpop.f32.mrf.mxu0
      %v1403 = vadd.f32 %v1082, %v1402
      %v1404 = vpop.f32.mrf.mxu0
      %1405 = vmatprep.mubr.f32.mxu0 0.0
      %1406 = vmatmul.mubr.f32.gmra.mxu0 %v1214
      %v1407 = vpop.f32.mrf.mxu0
      %v1408 = vadd.f32 %v1087, %v1407
      %v1409 = vpop.f32.mrf.mxu0
      %1410 = vmatprep.mubr.f32.mxu0 0.0
      %1411 = vmatmul.mubr.f32.gmra.mxu0 %v1217
      %v1412 = vpop.f32.mrf.mxu0
      %v1413 = vadd.f32 %v1092, %v1412
      %v1414 = vpop.f32.mrf.mxu0
      %1415 = vmatprep.mubr.f32.mxu0 0.0
      %1416 = vmatmul.mubr.f32.gmra.mxu0 %v1220
      %v1417 = vpop.f32.mrf.mxu0
      %v1418 = vadd.f32 %v1097, %v1417
      %v1419 = vpop.f32.mrf.mxu0
      %1420 = vmatprep.mubr.f32.mxu0 0.0
      %1421 = vmatmul.mubr.f32.gmra.mxu0 %v1223
      %v1422 = vpop.f32.mrf.mxu0
      %v1423 = vadd.f32 %v1102, %v1422
      %v1424 = vpop.f32.mrf.mxu0
      %1425 = vmatprep.mubr.f32.mxu0 0.0
      %1426 = vmatmul.mubr.f32.gmra.mxu0 %v1226
      %v1427 = vpop.f32.mrf.mxu0
      %v1428 = vadd.f32 %v1107, %v1427
      %v1429 = vpop.f32.mrf.mxu0
      %1430 = vmatprep.mubr.f32.mxu0 0.0
      %1431 = vmatmul.mubr.f32.gmra.mxu0 %v1229
      %v1432 = vpop.f32.mrf.mxu0
      %v1433 = vadd.f32 %v1112, %v1432
      %v1434 = vpop.f32.mrf.mxu0
      %1435 = vmatprep.mubr.f32.mxu0 0.0
      %1436 = vmatmul.mubr.f32.gmra.mxu0 %v1232
      %v1437 = vpop.f32.mrf.mxu0
      %v1438 = vadd.f32 %v1117, %v1437
      %v1439 = vpop.f32.mrf.mxu0
      %1440 = vmatprep.mubr.f32.mxu0 0.0
      %1441 = vmatmul.mubr.f32.gmra.mxu0 %v1235
      %v1442 = vpop.f32.mrf.mxu0
      %v1443 = vadd.f32 %v1122, %v1442
      %v1444 = vpop.f32.mrf.mxu0
      %1445 = vmatprep.mubr.f32.mxu0 0.0
      %1446 = vmatmul.mubr.f32.gmra.mxu0 %v1238
      %v1447 = vpop.f32.mrf.mxu0
      %v1448 = vadd.f32 %v1127, %v1447
      %v1449 = vpop.f32.mrf.mxu0
      %1450 = vmatprep.mubr.f32.mxu0 0.0
      %1451 = vmatmul.mubr.f32.gmra.mxu0 %v1241
      %v1452 = vpop.f32.mrf.mxu0
      %v1453 = vadd.f32 %v1132, %v1452
      %v1454 = vpop.f32.mrf.mxu0
      %1455 = vmatprep.mubr.f32.mxu0 0.0
      %1456 = vmatmul.mubr.f32.gmra.mxu0 %v1244
      %v1457 = vpop.f32.mrf.mxu0
      %v1458 = vadd.f32 %v1137, %v1457
      %v1459 = vpop.f32.mrf.mxu0
      %1460 = vmatprep.mubr.f32.mxu0 0.0
      %1461 = vmatmul.mubr.f32.gmra.mxu0 %v1247
      %v1462 = vpop.f32.mrf.mxu0
      %v1463 = vadd.f32 %v1142, %v1462
      %v1464 = vpop.f32.mrf.mxu0
      %1465 = vmatprep.mubr.f32.mxu0 0.0
      %1466 = vmatmul.mubr.f32.gmra.mxu0 %v1250
      %v1467 = vpop.f32.mrf.mxu0
      %v1468 = vadd.f32 %v1147, %v1467
      %v1469 = vpop.f32.mrf.mxu0
      %1470 = vmatprep.mubr.f32.mxu0 0.0
      %1471 = vmatmul.mubr.f32.gmra.mxu0 %v1253
      %v1472 = vpop.f32.mrf.mxu0
      %v1473 = vadd.f32 %v1152, %v1472
      %v1474 = vpop.f32.mrf.mxu0
      %1475 = vmatprep.mubr.f32.mxu0 0.0
      %1476 = vmatmul.mubr.f32.gmra.mxu0 %v1256
      %v1477 = vpop.f32.mrf.mxu0
      %v1478 = vadd.f32 %v1157, %v1477
      %v1479 = vpop.f32.mrf.mxu0
      %1480 = vmatprep.mubr.f32.mxu0 0.0
      %1481 = vmatmul.mubr.f32.gmra.mxu0 %v1259
      %v1482 = vpop.f32.mrf.mxu0
      %v1483 = vadd.f32 %v1162, %v1482
      %v1484 = vpop.f32.mrf.mxu0
      %1485 = vdwg.mxu0
      %v1486 = vmax.f32 %v1328, 0.0
      %v1487 = vmax.f32 %v1333, 0.0
      %v1488 = vmax.f32 %v1338, 0.0
      %v1489 = vmax.f32 %v1343, 0.0
      %v1490 = vmax.f32 %v1348, 0.0
      %v1491 = vmax.f32 %v1353, 0.0
      %v1492 = vmax.f32 %v1358, 0.0
      %v1493 = vmax.f32 %v1363, 0.0
      %v1494 = vmax.f32 %v1368, 0.0
      %v1495 = vmax.f32 %v1373, 0.0
      %v1496 = vmax.f32 %v1378, 0.0
      %v1497 = vmax.f32 %v1383, 0.0
      %v1498 = vmax.f32 %v1388, 0.0
      %v1499 = vmax.f32 %v1393, 0.0
      %v1500 = vmax.f32 %v1398, 0.0
      %v1501 = vmax.f32 %v1403, 0.0
      %v1502 = vmax.f32 %v1408, 0.0
      %v1503 = vmax.f32 %v1413, 0.0
      %v1504 = vmax.f32 %v1418, 0.0
      %v1505 = vmax.f32 %v1423, 0.0
      %v1506 = vmax.f32 %v1428, 0.0
      %v1507 = vmax.f32 %v1433, 0.0
      %v1508 = vmax.f32 %v1438, 0.0
      %v1509 = vmax.f32 %v1443, 0.0
      %v1510 = vmax.f32 %v1448, 0.0
      %v1511 = vmax.f32 %v1453, 0.0
      %v1512 = vmax.f32 %v1458, 0.0
      %v1513 = vmax.f32 %v1463, 0.0
      %v1514 = vmax.f32 %v1468, 0.0
      %v1515 = vmax.f32 %v1473, 0.0
      %v1516 = vmax.f32 %v1478, 0.0
      %v1517 = vmax.f32 %v1483, 0.0
      %v1518 = vld [vmem:[%s5] sm:$0xff]
      %v1519 = vld [vmem:[%s5 + $0x8] sm:$0xff]
      %v1520 = vld [vmem:[%s5 + $0x10] sm:$0xff]
      %v1521 = vld [vmem:[%s5 + $0x18] sm:$0xff]
      %v1522 = vld [vmem:[%s5 + $0x20] sm:$0xff]
      %v1523 = vld [vmem:[%s5 + $0x28] sm:$0xff]
      %v1524 = vld [vmem:[%s5 + $0x30] sm:$0xff]
      %v1525 = vld [vmem:[%s5 + $0x38] sm:$0xff]
      %v1526 = vld [vmem:[%s5 + $0x40] sm:$0xff]
      %v1527 = vld [vmem:[%s5 + $0x48] sm:$0xff]
      %v1528 = vld [vmem:[%s5 + $0x50] sm:$0xff]
      %v1529 = vld [vmem:[%s5 + $0x58] sm:$0xff]
      %v1530 = vld [vmem:[%s5 + $0x60] sm:$0xff]
      %v1531 = vld [vmem:[%s5 + $0x68] sm:$0xff]
      %v1532 = vld [vmem:[%s5 + $0x70] sm:$0xff]
      %v1533 = vld [vmem:[%s5 + $0x78] sm:$0xff]
      %v1534 = vld [vmem:[%s6] sm:$0xff]
      %v1535 = vld [vmem:[%s6 + $0x8] sm:$0xff]
      %v1536 = vld [vmem:[%s6 + $0x10] sm:$0xff]
      %v1537 = vld [vmem:[%s6 + $0x18] sm:$0xff]
      %v1538 = vld [vmem:[%s6 + $0x20] sm:$0xff]
      %v1539 = vld [vmem:[%s6 + $0x28] sm:$0xff]
      %v1540 = vld [vmem:[%s6 + $0x30] sm:$0xff]
      %v1541 = vld [vmem:[%s6 + $0x38] sm:$0xff]
      %1543 = vset.pattern.permute.xlu0 0
      %1544 = vperm.xlu0 %1543, %v1534
      %v1545 = vpop.permute.xlu0 %1544
      %1548 = vset.pattern.permute.xlu0 0
      %1549 = vperm.xlu0 %1548, %v1535
      %v1550 = vpop.permute.xlu0 %1549
      %1553 = vset.pattern.permute.xlu0 0
      %1554 = vperm.xlu0 %1553, %v1536
      %v1555 = vpop.permute.xlu0 %1554
      %1558 = vset.pattern.permute.xlu0 0
      %1559 = vperm.xlu0 %1558, %v1537
      %v1560 = vpop.permute.xlu0 %1559
      %1563 = vset.pattern.permute.xlu0 0
      %1564 = vperm.xlu0 %1563, %v1538
      %v1565 = vpop.permute.xlu0 %1564
      %1568 = vset.pattern.permute.xlu0 0
      %1569 = vperm.xlu0 %1568, %v1539
      %v1570 = vpop.permute.xlu0 %1569
      %1573 = vset.pattern.permute.xlu0 0
      %1574 = vperm.xlu0 %1573, %v1540
      %v1575 = vpop.permute.xlu0 %1574
      %1578 = vset.pattern.permute.xlu0 0
      %1579 = vperm.xlu0 %1578, %v1541
      %v1580 = vpop.permute.xlu0 %1579
      %1582 = vmatprep.subr.mxu0 0.0
      %1583 = vmatpush1.msra.mxu0 %v1501
      %1584 = vmatprep.subr.mxu0 0.0
      %1585 = vmatpush1.msra.mxu0 %v1500
      %1586 = vmatprep.subr.mxu0 0.0
      %1587 = vmatpush1.msra.mxu0 %v1499
      %1588 = vmatprep.subr.mxu0 0.0
      %1589 = vmatpush1.msra.mxu0 %v1498
      %1590 = vmatprep.subr.mxu0 0.0
      %1591 = vmatpush1.msra.mxu0 %v1497
      %1592 = vmatprep.subr.mxu0 0.0
      %1593 = vmatpush1.msra.mxu0 %v1496
      %1594 = vmatprep.subr.mxu0 0.0
      %1595 = vmatpush1.msra.mxu0 %v1495
      %1596 = vmatprep.subr.mxu0 0.0
      %1597 = vmatpush1.msra.mxu0 %v1494
      %1598 = vmatprep.subr.mxu0 0.0
      %1599 = vmatpush1.msra.mxu0 %v1493
      %1600 = vmatprep.subr.mxu0 0.0
      %1601 = vmatpush1.msra.mxu0 %v1492
      %1602 = vmatprep.subr.mxu0 0.0
      %1603 = vmatpush1.msra.mxu0 %v1491
      %1604 = vmatprep.subr.mxu0 0.0
      %1605 = vmatpush1.msra.mxu0 %v1490
      %1606 = vmatprep.subr.mxu0 0.0
      %1607 = vmatpush1.msra.mxu0 %v1489
      %1608 = vmatprep.subr.mxu0 0.0
      %1609 = vmatpush1.msra.mxu0 %v1488
      %1610 = vmatprep.subr.mxu0 0.0
      %1611 = vmatpush1.msra.mxu0 %v1487
      %1612 = vmatprep.subr.mxu0 0.0
      %1613 = vmatpush1.msra.mxu0 %v1486
      %1614 = vmatprep.subr.mxu0 0.0
      %1615 = vmatpush2.msra.mxu0 %v1517
      %1616 = vmatprep.subr.mxu0 0.0
      %1617 = vmatpush2.msra.mxu0 %v1516
      %1618 = vmatprep.subr.mxu0 0.0
      %1619 = vmatpush2.msra.mxu0 %v1515
      %1620 = vmatprep.subr.mxu0 0.0
      %1621 = vmatpush2.msra.mxu0 %v1514
      %1622 = vmatprep.subr.mxu0 0.0
      %1623 = vmatpush2.msra.mxu0 %v1513
      %1624 = vmatprep.subr.mxu0 0.0
      %1625 = vmatpush2.msra.mxu0 %v1512
      %1626 = vmatprep.subr.mxu0 0.0
      %1627 = vmatpush2.msra.mxu0 %v1511
      %1628 = vmatprep.subr.mxu0 0.0
      %1629 = vmatpush2.msra.mxu0 %v1510
      %1630 = vmatprep.subr.mxu0 0.0
      %1631 = vmatpush2.msra.mxu0 %v1509
      %1632 = vmatprep.subr.mxu0 0.0
      %1633 = vmatpush2.msra.mxu0 %v1508
      %1634 = vmatprep.subr.mxu0 0.0
      %1635 = vmatpush2.msra.mxu0 %v1507
      %1636 = vmatprep.subr.mxu0 0.0
      %1637 = vmatpush2.msra.mxu0 %v1506
      %1638 = vmatprep.subr.mxu0 0.0
      %1639 = vmatpush2.msra.mxu0 %v1505
      %1640 = vmatprep.subr.mxu0 0.0
      %1641 = vmatpush2.msra.mxu0 %v1504
      %1642 = vmatprep.subr.mxu0 0.0
      %1643 = vmatpush2.msra.mxu0 %v1503
      %1644 = vmatprep.subr.mxu0 0.0
      %1645 = vmatpush2.msra.mxu0 %v1502
      %1646 = vmatprep.mubr.f32.mxu0 %v1519
      %1647 = vmatmul.mubr.f32.gmra.mxu0 %v1518
      %v1648 = vpop.f32.mrf.mxu0
      %v1649 = vadd.f32 %v1545, %v1648
      %v1650 = vpop.f32.mrf.mxu0
      %1651 = vmatprep.mubr.f32.mxu0 %v1521
      %1652 = vmatmul.mubr.f32.gmra.mxu0 %v1520
      %v1653 = vpop.f32.mrf.mxu0
      %v1654 = vadd.f32 %v1550, %v1653
      %v1655 = vpop.f32.mrf.mxu0
      %1656 = vmatprep.mubr.f32.mxu0 %v1523
      %1657 = vmatmul.mubr.f32.gmra.mxu0 %v1522
      %v1658 = vpop.f32.mrf.mxu0
      %v1659 = vadd.f32 %v1555, %v1658
      %v1660 = vpop.f32.mrf.mxu0
      %1661 = vmatprep.mubr.f32.mxu0 %v1525
      %1662 = vmatmul.mubr.f32.gmra.mxu0 %v1524
      %v1663 = vpop.f32.mrf.mxu0
      %v1664 = vadd.f32 %v1560, %v1663
      %v1665 = vpop.f32.mrf.mxu0
      %1666 = vmatprep.mubr.f32.mxu0 %v1527
      %1667 = vmatmul.mubr.f32.gmra.mxu0 %v1526
      %v1668 = vpop.f32.mrf.mxu0
      %v1669 = vadd.f32 %v1565, %v1668
      %v1670 = vpop.f32.mrf.mxu0
      %1671 = vmatprep.mubr.f32.mxu0 %v1529
      %1672 = vmatmul.mubr.f32.gmra.mxu0 %v1528
      %v1673 = vpop.f32.mrf.mxu0
      %v1674 = vadd.f32 %v1570, %v1673
      %v1675 = vpop.f32.mrf.mxu0
      %1676 = vmatprep.mubr.f32.mxu0 %v1531
      %1677 = vmatmul.mubr.f32.gmra.mxu0 %v1530
      %v1678 = vpop.f32.mrf.mxu0
      %v1679 = vadd.f32 %v1575, %v1678
      %v1680 = vpop.f32.mrf.mxu0
      %1681 = vmatprep.mubr.f32.mxu0 %v1533
      %1682 = vmatmul.mubr.f32.gmra.mxu0 %v1532
      %v1683 = vpop.f32.mrf.mxu0
      %v1684 = vadd.f32 %v1580, %v1683
      %v1685 = vpop.f32.mrf.mxu0
      %1686 = vdwg.mxu0
      %v1687 = vmax.f32 %v1649, 0.0
      %v1688 = vmax.f32 %v1654, 0.0
      %v1689 = vmax.f32 %v1659, 0.0
      %v1690 = vmax.f32 %v1664, 0.0
      %v1691 = vmax.f32 %v1669, 0.0
      %v1692 = vmax.f32 %v1674, 0.0
      %v1693 = vmax.f32 %v1679, 0.0
      %v1694 = vmax.f32 %v1684, 0.0
      %v1695 = vld [vmem:[%s7] sm:$0xff]
      %v1696 = vld [vmem:[%s7 + $0x8] sm:$0xff]
      %v1697 = vld [vmem:[%s7 + $0x10] sm:$0xff]
      %v1698 = vld [vmem:[%s7 + $0x18] sm:$0xff]
      %v1699 = vld [vmem:[%s7 + $0x20] sm:$0x3]
      %v1700 = vld [vmem:[%s8] sm:$0xff]
      %v1701 = vld [vmem:[%s8 + $0x8] sm:$0xff]
      %v1702 = vld [vmem:[%s8 + $0x10] sm:$0xff]
      %v1703 = vld [vmem:[%s8 + $0x18] sm:$0xff]
      %v1704 = vld [vmem:[%s8 + $0x20] sm:$0x3]
      %1706 = vset.pattern.permute.xlu0 0
      %1707 = vperm.xlu0 %1706, %v1700
      %v1708 = vpop.permute.xlu0 %1707
      %1711 = vset.pattern.permute.xlu0 0
      %1712 = vperm.xlu0 %1711, %v1701
      %v1713 = vpop.permute.xlu0 %1712
      %1716 = vset.pattern.permute.xlu0 0
      %1717 = vperm.xlu0 %1716, %v1702
      %v1718 = vpop.permute.xlu0 %1717
      %1721 = vset.pattern.permute.xlu0 0
      %1722 = vperm.xlu0 %1721, %v1703
      %v1723 = vpop.permute.xlu0 %1722
      %1726 = vset.pattern.permute.xlu0 0
      %1727 = vperm.xlu0 %1726, %v1704
      %v1728 = vpop.permute.xlu0 %1727
      %vm1730 = vcmask 523264
      %v1732 = vsel %vm1730, %v1695, 0
      %v1735 = vsel %vm1730, %v1696, 0
      %v1738 = vsel %vm1730, %v1697, 0
      %v1741 = vsel %vm1730, %v1698, 0
      %v1744 = vsel %vm1730, %v1699, 0
      %1746 = vmatprep.subr.mxu0 0.0
      %1747 = vmatpush1.msra.mxu0 0.0
      %1748 = vmatprep.subr.mxu0 0.0
      %1749 = vmatpush1.msra.mxu0 0.0
      %1750 = vmatprep.subr.mxu0 0.0
      %1751 = vmatpush1.msra.mxu0 0.0
      %1752 = vmatprep.subr.mxu0 0.0
      %1753 = vmatpush1.msra.mxu0 0.0
      %1754 = vmatprep.subr.mxu0 0.0
      %1755 = vmatpush1.msra.mxu0 0.0
      %1756 = vmatprep.subr.mxu0 0.0
      %1757 = vmatpush1.msra.mxu0 0.0
      %1758 = vmatprep.subr.mxu0 0.0
      %1759 = vmatpush1.msra.mxu0 0.0
      %1760 = vmatprep.subr.mxu0 0.0
      %1761 = vmatpush1.msra.mxu0 0.0
      %1762 = vmatprep.subr.mxu0 0.0
      %1763 = vmatpush1.msra.mxu0 %v1694
      %1764 = vmatprep.subr.mxu0 0.0
      %1765 = vmatpush1.msra.mxu0 %v1693
      %1766 = vmatprep.subr.mxu0 0.0
      %1767 = vmatpush1.msra.mxu0 %v1692
      %1768 = vmatprep.subr.mxu0 0.0
      %1769 = vmatpush1.msra.mxu0 %v1691
      %1770 = vmatprep.subr.mxu0 0.0
      %1771 = vmatpush1.msra.mxu0 %v1690
      %1772 = vmatprep.subr.mxu0 0.0
      %1773 = vmatpush1.msra.mxu0 %v1689
      %1774 = vmatprep.subr.mxu0 0.0
      %1775 = vmatpush1.msra.mxu0 %v1688
      %1776 = vmatprep.subr.mxu0 0.0
      %1777 = vmatpush1.msra.mxu0 %v1687
      %1778 = vmatprep.subr.mxu0 0.0
      %1779 = vmatpush2.msra.mxu0 0.0
      %1780 = vmatprep.subr.mxu0 0.0
      %1781 = vmatpush2.msra.mxu0 0.0
      %1782 = vmatprep.subr.mxu0 0.0
      %1783 = vmatpush2.msra.mxu0 0.0
      %1784 = vmatprep.subr.mxu0 0.0
      %1785 = vmatpush2.msra.mxu0 0.0
      %1786 = vmatprep.subr.mxu0 0.0
      %1787 = vmatpush2.msra.mxu0 0.0
      %1788 = vmatprep.subr.mxu0 0.0
      %1789 = vmatpush2.msra.mxu0 0.0
      %1790 = vmatprep.subr.mxu0 0.0
      %1791 = vmatpush2.msra.mxu0 0.0
      %1792 = vmatprep.subr.mxu0 0.0
      %1793 = vmatpush2.msra.mxu0 0.0
      %1794 = vmatprep.subr.mxu0 0.0
      %1795 = vmatpush2.msra.mxu0 0.0
      %1796 = vmatprep.subr.mxu0 0.0
      %1797 = vmatpush2.msra.mxu0 0.0
      %1798 = vmatprep.subr.mxu0 0.0
      %1799 = vmatpush2.msra.mxu0 0.0
      %1800 = vmatprep.subr.mxu0 0.0
      %1801 = vmatpush2.msra.mxu0 0.0
      %1802 = vmatprep.subr.mxu0 0.0
      %1803 = vmatpush2.msra.mxu0 0.0
      %1804 = vmatprep.subr.mxu0 0.0
      %1805 = vmatpush2.msra.mxu0 0.0
      %1806 = vmatprep.subr.mxu0 0.0
      %1807 = vmatpush2.msra.mxu0 0.0
      %1808 = vmatprep.subr.mxu0 0.0
      %1809 = vmatpush2.msra.mxu0 0.0
      %1810 = vmatprep.mubr.f32.mxu0 0.0
      %1811 = vmatmul.mubr.f32.gmra.mxu0 %v1732
      %v1812 = vpop.f32.mrf.mxu0
      %v1813 = vadd.f32 %v1708, %v1812
      %v1814 = vpop.f32.mrf.mxu0
      %1815 = vmatprep.mubr.f32.mxu0 0.0
      %1816 = vmatmul.mubr.f32.gmra.mxu0 %v1735
      %v1817 = vpop.f32.mrf.mxu0
      %v1818 = vadd.f32 %v1713, %v1817
      %v1819 = vpop.f32.mrf.mxu0
      %1820 = vmatprep.mubr.f32.mxu0 0.0
      %1821 = vmatmul.mubr.f32.gmra.mxu0 %v1738
      %v1822 = vpop.f32.mrf.mxu0
      %v1823 = vadd.f32 %v1718, %v1822
      %v1824 = vpop.f32.mrf.mxu0
      %1825 = vmatprep.mubr.f32.mxu0 0.0
      %1826 = vmatmul.mubr.f32.gmra.mxu0 %v1741
      %v1827 = vpop.f32.mrf.mxu0
      %v1828 = vadd.f32 %v1723, %v1827
      %v1829 = vpop.f32.mrf.mxu0
      %1830 = vmatprep.mubr.f32.mxu0 0.0
      %1831 = vmatmul.mubr.f32.gmra.mxu0 %v1744
      %v1832 = vpop.f32.mrf.mxu0
      %v1833 = vadd.f32 %v1728, %v1832
      %v1834 = vpop.f32.mrf.mxu0
      %1835 = vdwg.mxu0
      %v1836 = vtanh.pop %v1813
      %v1837 = vtanh.pop %v1818
      %v1838 = vtanh.pop %v1823
      %v1839 = vtanh.pop %v1828
      %v1840 = vld [vmem:[%s9] sm:$0xff]
      %v1841 = vld [vmem:[%s9 + $0x8] sm:$0xff]
      %v1842 = vld [vmem:[%s9 + $0x10] sm:$0xff]
      %v1843 = vld [vmem:[%s9 + $0x18] sm:$0xff]
      %1845 = vset.pattern.permute.xlu0 0
      %1846 = vperm.xlu0 %1845, %v1840
      %v1847 = vpop.permute.xlu0 %1846
      %1850 = vset.pattern.permute.xlu0 0
      %1851 = vperm.xlu0 %1850, %v1841
      %v1852 = vpop.permute.xlu0 %1851
      %1855 = vset.pattern.permute.xlu0 0
      %1856 = vperm.xlu0 %1855, %v1842
      %v1857 = vpop.permute.xlu0 %1856
      %1860 = vset.pattern.permute.xlu0 0
      %1861 = vperm.xlu0 %1860, %v1843
      %v1862 = vpop.permute.xlu0 %1861
      %v1864 = vmul.f32 %v1836, %v1847
      %v1865 = vmul.f32 %v1837, %v1852
      %v1866 = vmul.f32 %v1838, %v1857
      %v1867 = vmul.f32 %v1839, %v1862
      %v1868 = vadd.f32 %v1864, %v1865
      %v1869 = vadd.f32 %v1868, %v1866
      %v1870 = vadd.f32 %v1869, %v1867
      %v1871 = vrot.slane %v1870, 4
      %v1872 = vadd.f32 %v1870, %v1871
      %v1873 = vrot.slane %v1872, 2
      %v1874 = vadd.f32 %v1872, %v1873
      %v1875 = vrot.slane %v1874, 1
      %v1876 = vadd.f32 %v1874, %v1875
      %v1877 = vld [vmem:[#allocation3] sm:$0x1]
      %1879 = vset.pattern.permute.xlu0 0
      %1880 = vperm.xlu0 %1879, %v1877
      %v1881 = vpop.permute.xlu0 %1880
      %v1883 = vlaneseq
      %v1884 = vshrl.u32 %v1883, 7
      %v1885 = vsub.s32 0, %v1884
      %v1886 = vrot.slane %v1881, %v1885
      %v1887 = vadd.f32 %v1876, %v1886
      %1888 = vst [vmem:[#allocation7] sm:$0xff] %v1687
      %1889 = vst [vmem:[#allocation7 + $0x8] sm:$0xff] %v1688
      %1890 = vst [vmem:[#allocation7 + $0x10] sm:$0xff] %v1689
      %1891 = vst [vmem:[#allocation7 + $0x18] sm:$0xff] %v1690
      %1892 = vst [vmem:[#allocation7 + $0x20] sm:$0xff] %v1691
      %1893 = vst [vmem:[#allocation7 + $0x28] sm:$0xff] %v1692
      %1894 = vst [vmem:[#allocation7 + $0x30] sm:$0xff] %v1693
      %1895 = vst [vmem:[#allocation7 + $0x38] sm:$0xff] %v1694
      %1896 = vst [vmem:[#allocation8] sm:$0x3] %v1833
      %1897 = vst [vmem:[#allocation10] sm:$0x1] %v1887
    $region57: #{tpu_custom_call.1} parent=1 // pred_fallthru
      _
    // Predicated region
    $region58: #{tpu_custom_call.1} parent=1 // pred_check
      _
    $region59: #{tpu_custom_call.1} parent=1 // pred_check_branch
      %1899 = sbr.rel (0) target = $region61
    $region60: #{tpu_custom_call.1} parent=1 // pred_region
      %s1901 = ssub.s32 1024, 1024
      %1902 = vsyncadd [#allocation6], %s1901
      %s1903 = sshll.u32 [#allocation7], 4
      %s1904 = int_to_ptr.vmem [resolvable:$true] %s1903
      %1909 = dma.vmem_to_hbm [thread:$0]  %s1904, 1024, %s11, [#allocation6], 128, 128, 8
    $region61: #{tpu_custom_call.1} parent=1 // pred_fallthru
      _
    // Predicated region
    $region62: #{tpu_custom_call.1} parent=1 // pred_check
      _
    $region63: #{tpu_custom_call.1} parent=1 // pred_check_branch
      %1911 = sbr.rel (0) target = $region65
    $region64: #{tpu_custom_call.1} parent=1 // pred_region
      %s1913 = ssub.s32 32, 32
      %1914 = vsyncadd [#allocation9], %s1913
      %s1916 = sshll.u32 [#allocation8], 4
      %s1917 = int_to_ptr.vmem [resolvable:$true] %s1916
      %1919 = dma.vmem_to_hbm [thread:$0]  %s1917, 32, %s12, [#allocation9]
    $region65: #{tpu_custom_call.1} parent=1 // pred_fallthru
      _
    // Predicated region
    $region66: #{tpu_custom_call.1} parent=1 // pred_check
      _
    $region67: #{tpu_custom_call.1} parent=1 // pred_check_branch
      %1921 = sbr.rel (0) target = $region69
    $region68: #{tpu_custom_call.1} parent=1 // pred_region
      %s1923 = ssub.s32 16, 16
      %1924 = vsyncadd [#allocation9], %s1923
      %s1926 = sshll.u32 [#allocation10], 4
      %s1927 = int_to_ptr.vmem [resolvable:$true] %s1926
      %1929 = dma.vmem_to_hbm [thread:$0]  %s1927, 16, %s13, [#allocation9]
    $region69: #{tpu_custom_call.1} parent=1 // pred_fallthru
      _
    // Predicated region
    $region70: #{tpu_custom_call.1} parent=1 // pred_check
      _
    $region71: #{tpu_custom_call.1} parent=1 // pred_check_branch
      %1931 = sbr.rel (0) target = $region73
    $region72: #{tpu_custom_call.1} parent=1 // pred_region
      %1932 = dma.done [#allocation6], 1024
    $region73: #{tpu_custom_call.1} parent=1 // pred_fallthru
      _
    // Predicated region
    $region74: #{tpu_custom_call.1} parent=1 // pred_check
      _
    $region75: #{tpu_custom_call.1} parent=1 // pred_check_branch
      %1934 = sbr.rel (0) target = $region77
    $region76: #{tpu_custom_call.1} parent=1 // pred_region
      %1935 = dma.done [#allocation9], 32
    $region77: #{tpu_custom_call.1} parent=1 // pred_fallthru
      _
    // Predicated region
    $region78: #{tpu_custom_call.1} parent=1 // pred_check
      _
    $region79: #{tpu_custom_call.1} parent=1 // pred_check_branch
      %1937 = sbr.rel (0) target = $region81
    $region80: #{tpu_custom_call.1} parent=1 // pred_region
      %1938 = dma.done [#allocation9], 16
    $region81: #{tpu_custom_call.1} parent=1 // pred_fallthru
      _
    %1939 = vsyncpa [#allocation5], 1
    %1940 = vsyncpa [#allocation6], 1
    %1941 = vsyncpa [#allocation9], 1

</llo_original>
